<compile_context>
chip_gen: v7x
topology: tpu7x:2x2x1
jax: 0.10.0
libtpu: 0.0.40
codegen_flags: <defaults>
</compile_context>

<pallas_src>
import functools
import math

import jax
import jax.numpy as jnp
from jax.experimental import pallas as pl
from jax.experimental.pallas import tpu as pltpu


BN_EPS = 1e-5
NUM_SUBSETS = 3
COFF = 4
KT = 9   # temporal kernel size


# ----------------------------------------------------------------------------
# Pallas kernels
# ----------------------------------------------------------------------------
def pointwise_kernel(x_ref, w_ref, b_ref, o_ref):
    # x: (1, Cin, M)  w: (C_all, Cin)  b: (C_all, 1)  o: (1, C_all, M)
    o_ref[0] = jnp.dot(w_ref[...], x_ref[0],
                       preferred_element_type=jnp.float32) + b_ref[...]


def gcn_kernel(u2_ref, a1_ref, adj_ref, bd_ref, y_ref, *,
               num_subsets, K, cout_T, V, off_down2, off_b2, inv_k, gcn_scale):
    # u2 : (1, C_all*T, V) fused pointwise output viewed with rows = (channel, t)
    # a1 : (1, S*V, K)     attention LHS, per subset a (V, K) block
    # adj: (S*V, V)        adj_a + adj_b, subsets stacked on rows
    # bd : (cout*T, 1)     conv_d bias summed over subsets, repeated over T
    # y  : (1, cout*T, V)  relu(bn(gcn) + down)
    atts = []
    for i in range(num_subsets):
        a1 = a1_ref[0, i * V:(i + 1) * V, :]                       # (V, K)
        a2 = u2_ref[0, off_b2 + i * K: off_b2 + (i + 1) * K, :]    # (K, V)
        s = jnp.dot(a1, a2, preferred_element_type=jnp.float32) * inv_k
        # nn.Softmax(-2) on (V, V): normalize over rows (axis 0)
        s = s - jnp.max(s, axis=0, keepdims=True)
        e = jnp.exp(s)
        inv = pl.reciprocal(jnp.sum(e, axis=0, keepdims=True), approx=True)
        atts.append(e * inv)
    att_cat = jnp.concatenate(atts, axis=0) + adj_ref[...]          # (S*V, V)

    # graph matmul: the 3 subsets folded into a single contraction of length S*V
    # (conv_d channel mixing was pre-applied to x; its bias is added here).
    xd_cat = jnp.concatenate(
        [u2_ref[0, i * cout_T:(i + 1) * cout_T, :] for i in range(num_subsets)],
        axis=1)                                                     # (cout*T, S*V)
    z = jnp.dot(xd_cat, att_cat, preferred_element_type=jnp.float32)
    down = u2_ref[0, off_down2: off_down2 + cout_T, :]              # (cout*T, V)
    y_ref[0] = jnp.maximum((z + bd_ref[...]) * gcn_scale + down, 0.0)


def tcn_kernel(y_ref, u_ref, w2_ref, bt_ref, o_ref, ypad_ref, *,
               cout, T, V, off_res):
    # y   : (1, cout, T*V)   gcn output (free reshape of (cout*T, V))
    # u   : (1, C_all, T*V)  fused pointwise output (residual rows read here)
    # w2  : (cout, KT*cout)  temporal conv weights, taps unrolled, BN folded
    # bt  : (cout, 1)
    # o   : (1, cout, T*V)
    # ypad: VMEM (cout, (T + 2*pad)*V) zero-padded temporal window
    pad = (KT - 1) // 2
    ypad_ref[...] = jnp.zeros_like(ypad_ref)
    ypad_ref[:, pad * V:(pad + T) * V] = y_ref[0]
    # 9 shifted views of the padded window -> single (cout, KT*cout) matmul.
    cols = jnp.concatenate(
        [ypad_ref[:, k * V: k * V + T * V] for k in range(KT)], axis=0)  # (KT*cout, T*V)
    tc = jnp.dot(w2_ref[...], cols, preferred_element_type=jnp.float32) + bt_ref[...]
    res = u_ref[0, off_res: off_res + cout, :]                       # (cout, T*V)
    o_ref[0] = jnp.maximum(tc + res, 0.0)


# ----------------------------------------------------------------------------
# Parameters (deterministic, shapes follow the PyTorch __init__)
# ----------------------------------------------------------------------------
def init_params(key, cin, cout, V):
    ci = cout // COFF
    ks = jax.random.split(key, 10)
    p = {}
    p["adj_a"] = jax.random.uniform(ks[0], (NUM_SUBSETS, V, V), jnp.float32,
                                    minval=0.0, maxval=0.2)
    p["adj_b"] = jnp.full((NUM_SUBSETS, V, V), 1e-6, jnp.float32)
    p["wa"] = jax.random.normal(ks[1], (NUM_SUBSETS, ci, cin), jnp.float32) * math.sqrt(2.0 / ci)
    p["ba"] = jnp.zeros((NUM_SUBSETS, ci), jnp.float32)
    p["wb"] = jax.random.normal(ks[2], (NUM_SUBSETS, ci, cin), jnp.float32) * math.sqrt(2.0 / ci)
    p["bb"] = jnp.zeros((NUM_SUBSETS, ci), jnp.float32)
    p["wd"] = jax.random.normal(ks[3], (NUM_SUBSETS, cout, cin), jnp.float32) * math.sqrt(
        2.0 / (cout * cin * 1 * NUM_SUBSETS))
    p["bd"] = jnp.zeros((NUM_SUBSETS, cout), jnp.float32)
    p["w_down"] = jax.random.normal(ks[4], (cout, cin), jnp.float32) * math.sqrt(2.0 / cout)
    p["b_down"] = jnp.zeros((cout,), jnp.float32)
    p["w_tcn"] = jax.random.normal(ks[5], (cout, cout, KT), jnp.float32) * math.sqrt(
        2.0 / (cout * KT))
    p["b_tcn"] = jnp.zeros((cout,), jnp.float32)
    p["w_res"] = jax.random.normal(ks[6], (cout, cin), jnp.float32) * math.sqrt(2.0 / cout)
    p["b_res"] = jnp.zeros((cout,), jnp.float32)
    return p


# ----------------------------------------------------------------------------
# Forward pass
# ----------------------------------------------------------------------------
def spatial_temporal_conv(x, p):
    N, C, T, V = x.shape
    S = NUM_SUBSETS
    cout = p["wd"].shape[1]
    ci = p["wa"].shape[1]
    M = T * V
    K = ci * T
    pad = (KT - 1) // 2
    s1 = 1.0 / math.sqrt(1.0 + BN_EPS)      # BN(gamma=1) folded scale
    gcn_scale = 1e-6 * s1                   # gcn BN (gamma=1e-6) folded scale

    # --- row layout of the fused pointwise output ------------------------
    # [ conv_d x3 | down | res | conv_a x3 | conv_b x3 ]  (all aligned slices)
    off_down, off_res = 3 * cout, 4 * cout
    off_a, off_b = 5 * cout, 5 * cout + 3 * ci
    c_all = 5 * cout + 6 * ci

    w_all = jnp.concatenate([
        p["wd"].reshape(S * cout, C),        # conv_d (bias added post graph-matmul)
        p["w_down"] * s1,                    # down branch, BN folded
        p["w_res"] * s1,                     # residual TemporalConv(k=1), BN folded
        p["wa"].reshape(S * ci, C),
        p["wb"].reshape(S * ci, C),
    ], axis=0)
    b_all = jnp.concatenate([
        jnp.zeros((S * cout,), jnp.float32),
        p["b_down"] * s1,
        p["b_res"] * s1,
        p["ba"].reshape(S * ci),
        p["bb"].reshape(S * ci),
    ], axis=0)[:, None]

    par = pltpu.CompilerParams(dimension_semantics=("parallel",))

    # --- 1) every 1x1 conv in one call (x read from HBM exactly once) ----
    x_flat = x.reshape(N, C, M)
    u = pl.pallas_call(
        pointwise_kernel,
        out_shape=jax.ShapeDtypeStruct((N, c_all, M), jnp.float32),
        grid=(N,),
        in_specs=[
            pl.BlockSpec((1, C, M), lambda n: (n, 0, 0)),
            pl.BlockSpec((c_all, C), lambda n: (0, 0)),
            pl.BlockSpec((c_all, 1), lambda n: (0, 0)),
        ],
        out_specs=pl.BlockSpec((1, c_all, M), lambda n: (n, 0, 0)),
        compiler_params=par,
    )(x_flat, w_all, b_all)

    # free (row-major preserving) reshape: rows become (channel, t)
    u2 = u.reshape(N, c_all * T, V)
    # attention LHS needs a genuine (tiny) transpose: (ci, T, V) -> (V, ci*T)
    a1s = (u[:, off_a:off_a + S * ci, :]
           .reshape(N, S, ci, T, V).transpose(0, 1, 4, 2, 3).reshape(N, S * V, K))
    adj_cat = (p["adj_a"] + p["adj_b"]).reshape(S * V, V)
    bd_rep = jnp.repeat(p["bd"].sum(axis=0), T)[:, None]            # (cout*T, 1)

    # --- 2) attention + graph matmul + gcn BN + down + relu --------------
    gcn = functools.partial(
        gcn_kernel, num_subsets=S, K=K, cout_T=cout * T, V=V,
        off_down2=off_down * T, off_b2=off_b * T,
        inv_k=1.0 / K, gcn_scale=gcn_scale)
    y = pl.pallas_call(
        gcn,
        out_shape=jax.ShapeDtypeStruct((N, cout * T, V), jnp.float32),
        grid=(N,),
        in_specs=[
            pl.BlockSpec((1, c_all * T, V), lambda n: (n, 0, 0)),
            pl.BlockSpec((1, S * V, K), lambda n: (n, 0, 0)),
            pl.BlockSpec((S * V, V), lambda n: (0, 0)),
            pl.BlockSpec((cout * T, 1), lambda n: (0, 0)),
        ],
        out_specs=pl.BlockSpec((1, cout * T, V), lambda n: (n, 0, 0)),
        compiler_params=par,
    )(u2, a1s, adj_cat, bd_rep)

    # --- 3) temporal conv (in-VMEM padded window, no HBM im2col) ---------
    yf = y.reshape(N, cout, M)                                      # free reshape
    w2 = (p["w_tcn"] * s1).transpose(0, 2, 1).reshape(cout, KT * cout)
    bt = (p["b_tcn"] * s1)[:, None]
    tcn = functools.partial(tcn_kernel, cout=cout, T=T, V=V, off_res=off_res)
    out = pl.pallas_call(
        tcn,
        out_shape=jax.ShapeDtypeStruct((N, cout, M), jnp.float32),
        grid=(N,),
        in_specs=[
            pl.BlockSpec((1, cout, M), lambda n: (n, 0, 0)),
            pl.BlockSpec((1, c_all, M), lambda n: (n, 0, 0)),
            pl.BlockSpec((cout, KT * cout), lambda n: (0, 0)),
            pl.BlockSpec((cout, 1), lambda n: (0, 0)),
        ],
        out_specs=pl.BlockSpec((1, cout, M), lambda n: (n, 0, 0)),
        scratch_shapes=[pltpu.VMEM((cout, (T + 2 * pad) * V), jnp.float32)],
        compiler_params=par,
    )(yf, u, w2, bt)

    return out.reshape(N, cout, T, V)


# ----------------------------------------------------------------------------
# Pure-JAX reference (mirrors the PyTorch forward, inference-mode BN)
# ----------------------------------------------------------------------------
def reference_forward(x, p):
    N, C, T, V = x.shape
    cout = p["wd"].shape[1]
    ci = p["wa"].shape[1]
    s1 = 1.0 / jnp.sqrt(1.0 + BN_EPS)
    adj = p["adj_a"] + p["adj_b"]
    y = 0.0
    for i in range(NUM_SUBSETS):
        A1 = jnp.einsum("oc,nctv->notv", p["wa"][i], x) + p["ba"][i][None, :, None, None]
        A2 = jnp.einsum("oc,nctv->notv", p["wb"][i], x) + p["bb"][i][None, :, None, None]
        A1 = A1.transpose(0, 3, 1, 2).reshape(N, V, ci * T)
        A2 = A2.reshape(N, ci * T, V)
        S = jax.nn.softmax(jnp.matmul(A1, A2) / (ci * T), axis=-2) + adj[i]
        z = jnp.matmul(x.reshape(N, C * T, V), S).reshape(N, C, T, V)
        z = jnp.einsum("oc,nctv->notv", p["wd"][i], z) + p["bd"][i][None, :, None, None]
        y = y + z
    y = y * (1e-6 * s1)
    down = (jnp.einsum("oc,nctv->notv", p["w_down"], x)
            + p["b_down"][None, :, None, None]) * s1
    y = jax.nn.relu(y + down)
    yp = jnp.pad(y, ((0, 0), (0, 0), (4, 4), (0, 0)))
    cols = jnp.stack([yp[:, :, k:k + T, :] for k in range(KT)], axis=2)
    tc = (jnp.einsum("pok,noktv->nptv", p["w_tcn"], cols)
          + p["b_tcn"][None, :, None, None]) * s1
    res = (jnp.einsum("oc,nctv->notv", p["w_res"], x)
           + p["b_res"][None, :, None, None]) * s1
    return jax.nn.relu(tc + res)


# ----------------------------------------------------------------------------
if __name__ == "__main__":
    N, C_IN, C_OUT, T, V = 2, 4, 8, 16, 16

    key = jax.random.PRNGKey(0)
    k_x, k_p = jax.random.split(key)
    x = jax.random.normal(k_x, (N, C_IN, T, V), jnp.float32)
    params = init_params(k_p, C_IN, C_OUT, V)

    out = jax.jit(spatial_temporal_conv)(x, params)
    out = jax.block_until_ready(out)

    ref = reference_forward(x, params)
    assert out.shape == (N, C_OUT, T, V)
    assert jnp.allclose(out, ref, rtol=1e-4, atol=1e-5)

    print("KERNEL_OK")
</pallas_src>

<mosaic_0001>
module attributes {stable_mosaic.version = 11 : i64} {
  func.func @pointwise_kernel(%arg0: i32, %arg1: memref<1x4x256xf32, #tpu.memory_space<vmem>>, %arg2: memref<52x4xf32, #tpu.memory_space<vmem>>, %arg3: memref<52x1xf32, #tpu.memory_space<vmem>>, %arg4: memref<1x52x256xf32, #tpu.memory_space<vmem>>) attributes {dimension_semantics = [#tpu.dimension_semantics<parallel>], iteration_bounds = array<i64: 2>, scalar_prefetch = 0 : i64, scratch_operands = 0 : i64, tpu.core_type = #tpu.core_type<tc>, window_params = [{transform_indices = @transform_0, window_bounds = array<i64: 1, 4, 256>}, {pipeline_mode = #tpu.pipeline_mode<synchronous>, transform_indices = @transform_1, window_bounds = array<i64: 52, 4>}, {pipeline_mode = #tpu.pipeline_mode<synchronous>, transform_indices = @transform_2, window_bounds = array<i64: 52, 1>}, {transform_indices = @transform_3, window_bounds = array<i64: 1, 52, 256>}]} {
    %c0 = arith.constant 0 : index
    %c0_0 = arith.constant 0 : index
    %0 = vector.load %arg2[%c0, %c0_0] : memref<52x4xf32, #tpu.memory_space<vmem>>, vector<52x4xf32>
    %c0_1 = arith.constant 0 : index
    %c0_2 = arith.constant 0 : index
    %c0_3 = arith.constant 0 : index
    %1 = vector.load %arg1[%c0_1, %c0_2, %c0_3] : memref<1x4x256xf32, #tpu.memory_space<vmem>>, vector<1x4x256xf32>
    %2 = vector.shape_cast %1 : vector<1x4x256xf32> to vector<4x256xf32>
    %cst = arith.constant dense<0.000000e+00> : vector<52x256xf32>
    %3 = tpu.matmul %0, %2, %cst {dimension_numbers = #tpu.dot_dimension_numbers<[1], [0], [0], [1], [0, 0, 1, 1], [], []>} : vector<52x4xf32>, vector<4x256xf32>, vector<52x256xf32> -> vector<52x256xf32>
    %c0_4 = arith.constant 0 : index
    %c0_5 = arith.constant 0 : index
    %4 = vector.load %arg3[%c0_4, %c0_5] : memref<52x1xf32, #tpu.memory_space<vmem>>, vector<52x1xf32>
    %5 = vector.broadcast %4 : vector<52x1xf32> to vector<52x256xf32>
    %6 = arith.addf %3, %5 : vector<52x256xf32>
    %c0_6 = arith.constant 0 : index
    %c0_7 = arith.constant 0 : index
    %c0_8 = arith.constant 0 : index
    %7 = vector.load %arg4[%c0_6, %c0_7, %c0_8] : memref<1x52x256xf32, #tpu.memory_space<vmem>>, vector<1x52x256xf32>
    %8 = vector.shape_cast %7 : vector<1x52x256xf32> to vector<52x256xf32>
    %9 = vector.shape_cast %6 : vector<52x256xf32> to vector<1x52x256xf32>
    tpu.vector_store %arg4[%c0_6, %c0_7, %c0_8], %9 {strides = array<i32>} : memref<1x52x256xf32, #tpu.memory_space<vmem>>, vector<1x52x256xf32>,
    return
  }
  func.func @transform_0(%arg0: i32) -> (i32, i32, i32) {
    %c0_i32 = arith.constant 0 : i32
    %c0_i32_0 = arith.constant 0 : i32
    %c0_i32_1 = arith.constant 0 : i32
    return %arg0, %c0_i32, %c0_i32_0 : i32, i32, i32
  }
  func.func @transform_1(%arg0: i32) -> (i32, i32) {
    %c0_i32 = arith.constant 0 : i32
    %c0_i32_0 = arith.constant 0 : i32
    %c0_i32_1 = arith.constant 0 : i32
    return %c0_i32, %c0_i32_0 : i32, i32
  }
  func.func @transform_2(%arg0: i32) -> (i32, i32) {
    %c0_i32 = arith.constant 0 : i32
    %c0_i32_0 = arith.constant 0 : i32
    %c0_i32_1 = arith.constant 0 : i32
    return %c0_i32, %c0_i32_0 : i32, i32
  }
  func.func @transform_3(%arg0: i32) -> (i32, i32, i32) {
    %c0_i32 = arith.constant 0 : i32
    %c0_i32_0 = arith.constant 0 : i32
    %c0_i32_1 = arith.constant 0 : i32
    return %arg0, %c0_i32, %c0_i32_0 : i32, i32, i32
  }
}

module attributes {stable_mosaic.version = 11 : i64} {
  func.func @gcn_kernel(%arg0: i32, %arg1: memref<1x832x16xf32, #tpu.memory_space<vmem>>, %arg2: memref<1x48x32xf32, #tpu.memory_space<vmem>>, %arg3: memref<48x16xf32, #tpu.memory_space<vmem>>, %arg4: memref<128x1xf32, #tpu.memory_space<vmem>>, %arg5: memref<1x128x16xf32, #tpu.memory_space<vmem>>) attributes {dimension_semantics = [#tpu.dimension_semantics<parallel>], iteration_bounds = array<i64: 2>, scalar_prefetch = 0 : i64, scratch_operands = 0 : i64, tpu.core_type = #tpu.core_type<tc>, window_params = [{transform_indices = @transform_0, window_bounds = array<i64: 1, 832, 16>}, {transform_indices = @transform_1, window_bounds = array<i64: 1, 48, 32>}, {pipeline_mode = #tpu.pipeline_mode<synchronous>, transform_indices = @transform_2, window_bounds = array<i64: 48, 16>}, {pipeline_mode = #tpu.pipeline_mode<synchronous>, transform_indices = @transform_3, window_bounds = array<i64: 128, 1>}, {transform_indices = @transform_4, window_bounds = array<i64: 1, 128, 16>}]} {
    %c0 = arith.constant 0 : index
    %c0_0 = arith.constant 0 : index
    %c0_1 = arith.constant 0 : index
    %0 = vector.load %arg2[%c0, %c0_0, %c0_1] : memref<1x48x32xf32, #tpu.memory_space<vmem>>, vector<1x16x32xf32>
    %1 = vector.shape_cast %0 : vector<1x16x32xf32> to vector<16x32xf32>
    %c0_2 = arith.constant 0 : index
    %c736 = arith.constant 736 : index
    %c0_3 = arith.constant 0 : index
    %2 = vector.load %arg1[%c0_2, %c736, %c0_3] : memref<1x832x16xf32, #tpu.memory_space<vmem>>, vector<1x32x16xf32>
    %3 = vector.shape_cast %2 : vector<1x32x16xf32> to vector<32x16xf32>
    %cst = arith.constant dense<0.000000e+00> : vector<16x16xf32>
    %4 = tpu.matmul %1, %3, %cst {dimension_numbers = #tpu.dot_dimension_numbers<[1], [0], [0], [1], [0, 0, 1, 1], [], []>} : vector<16x32xf32>, vector<32x16xf32>, vector<16x16xf32> -> vector<16x16xf32>
    %cst_4 = arith.constant 3.125000e-02 : f32
    %5 = vector.broadcast %cst_4 : f32 to vector<16x16xf32>
    %6 = arith.mulf %4, %5 : vector<16x16xf32>
    %cst_5 = arith.constant dense<0xFF800000> : vector<16xf32>
    %7 = vector.multi_reduction <maximumf>, %6, %cst_5 [0] : vector<16x16xf32> to vector<16xf32>
    %8 = vector.shape_cast %7 : vector<16xf32> to vector<1x16xf32>
    %9 = vector.broadcast %8 : vector<1x16xf32> to vector<16x16xf32>
    %10 = arith.subf %6, %9 : vector<16x16xf32>
    %11 = math.exp %10 : vector<16x16xf32>
    %cst_6 = arith.constant dense<0.000000e+00> : vector<16xf32>
    %12 = vector.multi_reduction <add>, %11, %cst_6 [0] : vector<16x16xf32> to vector<16xf32>
    %13 = vector.shape_cast %12 : vector<16xf32> to vector<1x16xf32>
    %14 = tpu.reciprocal %13 {approx = true} : vector<1x16xf32> -> vector<1x16xf32>
    %15 = vector.broadcast %14 : vector<1x16xf32> to vector<16x16xf32>
    %16 = arith.mulf %11, %15 : vector<16x16xf32>
    %c0_7 = arith.constant 0 : index
    %c16 = arith.constant 16 : index
    %c0_8 = arith.constant 0 : index
    %17 = vector.load %arg2[%c0_7, %c16, %c0_8] : memref<1x48x32xf32, #tpu.memory_space<vmem>>, vector<1x16x32xf32>
    %18 = vector.shape_cast %17 : vector<1x16x32xf32> to vector<16x32xf32>
    %c0_9 = arith.constant 0 : index
    %c768 = arith.constant 768 : index
    %c0_10 = arith.constant 0 : index
    %19 = vector.load %arg1[%c0_9, %c768, %c0_10] : memref<1x832x16xf32, #tpu.memory_space<vmem>>, vector<1x32x16xf32>
    %20 = vector.shape_cast %19 : vector<1x32x16xf32> to vector<32x16xf32>
    %cst_11 = arith.constant dense<0.000000e+00> : vector<16x16xf32>
    %21 = tpu.matmul %18, %20, %cst_11 {dimension_numbers = #tpu.dot_dimension_numbers<[1], [0], [0], [1], [0, 0, 1, 1], [], []>} : vector<16x32xf32>, vector<32x16xf32>, vector<16x16xf32> -> vector<16x16xf32>
    %cst_12 = arith.constant 3.125000e-02 : f32
    %22 = vector.broadcast %cst_12 : f32 to vector<16x16xf32>
    %23 = arith.mulf %21, %22 : vector<16x16xf32>
    %cst_13 = arith.constant dense<0xFF800000> : vector<16xf32>
    %24 = vector.multi_reduction <maximumf>, %23, %cst_13 [0] : vector<16x16xf32> to vector<16xf32>
    %25 = vector.shape_cast %24 : vector<16xf32> to vector<1x16xf32>
    %26 = vector.broadcast %25 : vector<1x16xf32> to vector<16x16xf32>
    %27 = arith.subf %23, %26 : vector<16x16xf32>
    %28 = math.exp %27 : vector<16x16xf32>
    %cst_14 = arith.constant dense<0.000000e+00> : vector<16xf32>
    %29 = vector.multi_reduction <add>, %28, %cst_14 [0] : vector<16x16xf32> to vector<16xf32>
    %30 = vector.shape_cast %29 : vector<16xf32> to vector<1x16xf32>
    %31 = tpu.reciprocal %30 {approx = true} : vector<1x16xf32> -> vector<1x16xf32>
    %32 = vector.broadcast %31 : vector<1x16xf32> to vector<16x16xf32>
    %33 = arith.mulf %28, %32 : vector<16x16xf32>
    %c0_15 = arith.constant 0 : index
    %c32 = arith.constant 32 : index
    %c0_16 = arith.constant 0 : index
    %34 = vector.load %arg2[%c0_15, %c32, %c0_16] : memref<1x48x32xf32, #tpu.memory_space<vmem>>, vector<1x16x32xf32>
    %35 = vector.shape_cast %34 : vector<1x16x32xf32> to vector<16x32xf32>
    %c0_17 = arith.constant 0 : index
    %c800 = arith.constant 800 : index
    %c0_18 = arith.constant 0 : index
    %36 = vector.load %arg1[%c0_17, %c800, %c0_18] : memref<1x832x16xf32, #tpu.memory_space<vmem>>, vector<1x32x16xf32>
    %37 = vector.shape_cast %36 : vector<1x32x16xf32> to vector<32x16xf32>
    %cst_19 = arith.constant dense<0.000000e+00> : vector<16x16xf32>
    %38 = tpu.matmul %35, %37, %cst_19 {dimension_numbers = #tpu.dot_dimension_numbers<[1], [0], [0], [1], [0, 0, 1, 1], [], []>} : vector<16x32xf32>, vector<32x16xf32>, vector<16x16xf32> -> vector<16x16xf32>
    %cst_20 = arith.constant 3.125000e-02 : f32
    %39 = vector.broadcast %cst_20 : f32 to vector<16x16xf32>
    %40 = arith.mulf %38, %39 : vector<16x16xf32>
    %cst_21 = arith.constant dense<0xFF800000> : vector<16xf32>
    %41 = vector.multi_reduction <maximumf>, %40, %cst_21 [0] : vector<16x16xf32> to vector<16xf32>
    %42 = vector.shape_cast %41 : vector<16xf32> to vector<1x16xf32>
    %43 = vector.broadcast %42 : vector<1x16xf32> to vector<16x16xf32>
    %44 = arith.subf %40, %43 : vector<16x16xf32>
    %45 = math.exp %44 : vector<16x16xf32>
    %cst_22 = arith.constant dense<0.000000e+00> : vector<16xf32>
    %46 = vector.multi_reduction <add>, %45, %cst_22 [0] : vector<16x16xf32> to vector<16xf32>
    %47 = vector.shape_cast %46 : vector<16xf32> to vector<1x16xf32>
    %48 = tpu.reciprocal %47 {approx = true} : vector<1x16xf32> -> vector<1x16xf32>
    %49 = vector.broadcast %48 : vector<1x16xf32> to vector<16x16xf32>
    %50 = arith.mulf %45, %49 : vector<16x16xf32>
    %51 = tpu.concatenate %16, %33, %50 in 0 : vector<16x16xf32>, vector<16x16xf32>, vector<16x16xf32> -> vector<48x16xf32>
    %c0_23 = arith.constant 0 : index
    %c0_24 = arith.constant 0 : index
    %52 = vector.load %arg3[%c0_23, %c0_24] : memref<48x16xf32, #tpu.memory_space<vmem>>, vector<48x16xf32>
    %53 = arith.addf %51, %52 : vector<48x16xf32>
    %c0_25 = arith.constant 0 : index
    %c0_26 = arith.constant 0 : index
    %c0_27 = arith.constant 0 : index
    %54 = vector.load %arg1[%c0_25, %c0_26, %c0_27] : memref<1x832x16xf32, #tpu.memory_space<vmem>>, vector<1x128x16xf32>
    %55 = vector.shape_cast %54 : vector<1x128x16xf32> to vector<128x16xf32>
    %c0_28 = arith.constant 0 : index
    %c128 = arith.constant 128 : index
    %c0_29 = arith.constant 0 : index
    %56 = vector.load %arg1[%c0_28, %c128, %c0_29] : memref<1x832x16xf32, #tpu.memory_space<vmem>>, vector<1x128x16xf32>
    %57 = vector.shape_cast %56 : vector<1x128x16xf32> to vector<128x16xf32>
    %c0_30 = arith.constant 0 : index
    %c256 = arith.constant 256 : index
    %c0_31 = arith.constant 0 : index
    %58 = vector.load %arg1[%c0_30, %c256, %c0_31] : memref<1x832x16xf32, #tpu.memory_space<vmem>>, vector<1x128x16xf32>
    %59 = vector.shape_cast %58 : vector<1x128x16xf32> to vector<128x16xf32>
    %60 = tpu.concatenate %55, %57, %59 in 1 : vector<128x16xf32>, vector<128x16xf32>, vector<128x16xf32> -> vector<128x48xf32>
    %cst_32 = arith.constant dense<0.000000e+00> : vector<128x16xf32>
    %61 = tpu.matmul %60, %53, %cst_32 {dimension_numbers = #tpu.dot_dimension_numbers<[1], [0], [0], [1], [0, 0, 1, 1], [], []>} : vector<128x48xf32>, vector<48x16xf32>, vector<128x16xf32> -> vector<128x16xf32>
    %c0_33 = arith.constant 0 : index
    %c384 = arith.constant 384 : index
    %c0_34 = arith.constant 0 : index
    %62 = vector.load %arg1[%c0_33, %c384, %c0_34] : memref<1x832x16xf32, #tpu.memory_space<vmem>>, vector<1x128x16xf32>
    %63 = vector.shape_cast %62 : vector<1x128x16xf32> to vector<128x16xf32>
    %c0_35 = arith.constant 0 : index
    %c0_36 = arith.constant 0 : index
    %64 = vector.load %arg4[%c0_35, %c0_36] : memref<128x1xf32, #tpu.memory_space<vmem>>, vector<128x1xf32>
    %65 = vector.broadcast %64 : vector<128x1xf32> to vector<128x16xf32>
    %66 = arith.addf %61, %65 : vector<128x16xf32>
    %cst_37 = arith.constant 9.99994995E-7 : f32
    %67 = vector.broadcast %cst_37 : f32 to vector<128x16xf32>
    %68 = arith.mulf %66, %67 : vector<128x16xf32>
    %69 = arith.addf %68, %63 : vector<128x16xf32>
    %cst_38 = arith.constant 0.000000e+00 : f32
    %70 = vector.broadcast %cst_38 : f32 to vector<128x16xf32>
    %71 = arith.maximumf %69, %70 : vector<128x16xf32>
    %c0_39 = arith.constant 0 : index
    %c0_40 = arith.constant 0 : index
    %c0_41 = arith.constant 0 : index
    %72 = vector.load %arg5[%c0_39, %c0_40, %c0_41] : memref<1x128x16xf32, #tpu.memory_space<vmem>>, vector<1x128x16xf32>
    %73 = vector.shape_cast %72 : vector<1x128x16xf32> to vector<128x16xf32>
    %74 = vector.shape_cast %71 : vector<128x16xf32> to vector<1x128x16xf32>
    tpu.vector_store %arg5[%c0_39, %c0_40, %c0_41], %74 {strides = array<i32>} : memref<1x128x16xf32, #tpu.memory_space<vmem>>, vector<1x128x16xf32>,
    return
  }
  func.func @transform_0(%arg0: i32) -> (i32, i32, i32) {
    %c0_i32 = arith.constant 0 : i32
    %c0_i32_0 = arith.constant 0 : i32
    %c0_i32_1 = arith.constant 0 : i32
    return %arg0, %c0_i32, %c0_i32_0 : i32, i32, i32
  }
  func.func @transform_1(%arg0: i32) -> (i32, i32, i32) {
    %c0_i32 = arith.constant 0 : i32
    %c0_i32_0 = arith.constant 0 : i32
    %c0_i32_1 = arith.constant 0 : i32
    return %arg0, %c0_i32, %c0_i32_0 : i32, i32, i32
  }
  func.func @transform_2(%arg0: i32) -> (i32, i32) {
    %c0_i32 = arith.constant 0 : i32
    %c0_i32_0 = arith.constant 0 : i32
    %c0_i32_1 = arith.constant 0 : i32
    return %c0_i32, %c0_i32_0 : i32, i32
  }
  func.func @transform_3(%arg0: i32) -> (i32, i32) {
    %c0_i32 = arith.constant 0 : i32
    %c0_i32_0 = arith.constant 0 : i32
    %c0_i32_1 = arith.constant 0 : i32
    return %c0_i32, %c0_i32_0 : i32, i32
  }
  func.func @transform_4(%arg0: i32) -> (i32, i32, i32) {
    %c0_i32 = arith.constant 0 : i32
    %c0_i32_0 = arith.constant 0 : i32
    %c0_i32_1 = arith.constant 0 : i32
    return %arg0, %c0_i32, %c0_i32_0 : i32, i32, i32
  }
}

module attributes {stable_mosaic.version = 11 : i64} {
  func.func @tcn_kernel(%arg0: i32, %arg1: memref<1x8x256xf32, #tpu.memory_space<vmem>>, %arg2: memref<1x52x256xf32, #tpu.memory_space<vmem>>, %arg3: memref<8x72xf32, #tpu.memory_space<vmem>>, %arg4: memref<8x1xf32, #tpu.memory_space<vmem>>, %arg5: memref<1x8x256xf32, #tpu.memory_space<vmem>>, %arg6: memref<8x384xf32, #tpu.memory_space<vmem>>) attributes {dimension_semantics = [#tpu.dimension_semantics<parallel>], iteration_bounds = array<i64: 2>, scalar_prefetch = 0 : i64, scratch_operands = 1 : i64, tpu.core_type = #tpu.core_type<tc>, window_params = [{transform_indices = @transform_0, window_bounds = array<i64: 1, 8, 256>}, {transform_indices = @transform_1, window_bounds = array<i64: 1, 52, 256>}, {pipeline_mode = #tpu.pipeline_mode<synchronous>, transform_indices = @transform_2, window_bounds = array<i64: 8, 72>}, {pipeline_mode = #tpu.pipeline_mode<synchronous>, transform_indices = @transform_3, window_bounds = array<i64: 8, 1>}, {transform_indices = @transform_4, window_bounds = array<i64: 1, 8, 256>}]} {
    %cst = arith.constant 0.000000e+00 : f32
    %0 = vector.broadcast %cst : f32 to vector<8x384xf32>
    %c0 = arith.constant 0 : index
    %c0_0 = arith.constant 0 : index
    %1 = vector.load %arg6[%c0, %c0_0] : memref<8x384xf32, #tpu.memory_space<vmem>>, vector<8x384xf32>
    tpu.vector_store %arg6[%c0, %c0_0], %0 {strides = array<i32>} : memref<8x384xf32, #tpu.memory_space<vmem>>, vector<8x384xf32>,
    %c0_1 = arith.constant 0 : index
    %c0_2 = arith.constant 0 : index
    %c0_3 = arith.constant 0 : index
    %2 = vector.load %arg1[%c0_1, %c0_2, %c0_3] : memref<1x8x256xf32, #tpu.memory_space<vmem>>, vector<1x8x256xf32>
    %3 = vector.shape_cast %2 : vector<1x8x256xf32> to vector<8x256xf32>
    %c0_4 = arith.constant 0 : index
    %c64 = arith.constant 64 : index
    %4 = vector.load %arg6[%c0_4, %c64] : memref<8x384xf32, #tpu.memory_space<vmem>>, vector<8x256xf32>
    tpu.vector_store %arg6[%c0_4, %c64], %3 {strides = array<i32>} : memref<8x384xf32, #tpu.memory_space<vmem>>, vector<8x256xf32>,
    %c0_5 = arith.constant 0 : index
    %c0_6 = arith.constant 0 : index
    %5 = vector.load %arg6[%c0_5, %c0_6] : memref<8x384xf32, #tpu.memory_space<vmem>>, vector<8x256xf32>
    %c0_7 = arith.constant 0 : index
    %c16 = arith.constant 16 : index
    %6 = vector.load %arg6[%c0_7, %c16] : memref<8x384xf32, #tpu.memory_space<vmem>>, vector<8x256xf32>
    %c0_8 = arith.constant 0 : index
    %c32 = arith.constant 32 : index
    %7 = vector.load %arg6[%c0_8, %c32] : memref<8x384xf32, #tpu.memory_space<vmem>>, vector<8x256xf32>
    %c0_9 = arith.constant 0 : index
    %c48 = arith.constant 48 : index
    %8 = vector.load %arg6[%c0_9, %c48] : memref<8x384xf32, #tpu.memory_space<vmem>>, vector<8x256xf32>
    %c0_10 = arith.constant 0 : index
    %c64_11 = arith.constant 64 : index
    %9 = vector.load %arg6[%c0_10, %c64_11] : memref<8x384xf32, #tpu.memory_space<vmem>>, vector<8x256xf32>
    %c0_12 = arith.constant 0 : index
    %c80 = arith.constant 80 : index
    %10 = vector.load %arg6[%c0_12, %c80] : memref<8x384xf32, #tpu.memory_space<vmem>>, vector<8x256xf32>
    %c0_13 = arith.constant 0 : index
    %c96 = arith.constant 96 : index
    %11 = vector.load %arg6[%c0_13, %c96] : memref<8x384xf32, #tpu.memory_space<vmem>>, vector<8x256xf32>
    %c0_14 = arith.constant 0 : index
    %c112 = arith.constant 112 : index
    %12 = vector.load %arg6[%c0_14, %c112] : memref<8x384xf32, #tpu.memory_space<vmem>>, vector<8x256xf32>
    %c0_15 = arith.constant 0 : index
    %c128 = arith.constant 128 : index
    %13 = vector.load %arg6[%c0_15, %c128] : memref<8x384xf32, #tpu.memory_space<vmem>>, vector<8x256xf32>
    %14 = tpu.concatenate %5, %6, %7, %8, %9, %10, %11, %12, %13 in 0 : vector<8x256xf32>, vector<8x256xf32>, vector<8x256xf32>, vector<8x256xf32>, vector<8x256xf32>, vector<8x256xf32>, vector<8x256xf32>, vector<8x256xf32>, vector<8x256xf32> -> vector<72x256xf32>
    %c0_16 = arith.constant 0 : index
    %c0_17 = arith.constant 0 : index
    %15 = vector.load %arg3[%c0_16, %c0_17] : memref<8x72xf32, #tpu.memory_space<vmem>>, vector<8x72xf32>
    %cst_18 = arith.constant dense<0.000000e+00> : vector<8x256xf32>
    %16 = tpu.matmul %15, %14, %cst_18 {dimension_numbers = #tpu.dot_dimension_numbers<[1], [0], [0], [1], [0, 0, 1, 1], [], []>} : vector<8x72xf32>, vector<72x256xf32>, vector<8x256xf32> -> vector<8x256xf32>
    %c0_19 = arith.constant 0 : index
    %c0_20 = arith.constant 0 : index
    %17 = vector.load %arg4[%c0_19, %c0_20] : memref<8x1xf32, #tpu.memory_space<vmem>>, vector<8x1xf32>
    %18 = vector.broadcast %17 : vector<8x1xf32> to vector<8x256xf32>
    %19 = arith.addf %16, %18 : vector<8x256xf32>
    %c0_21 = arith.constant 0 : index
    %c32_22 = arith.constant 32 : index
    %c0_23 = arith.constant 0 : index
    %20 = vector.load %arg2[%c0_21, %c32_22, %c0_23] : memref<1x52x256xf32, #tpu.memory_space<vmem>>, vector<1x8x256xf32>
    %21 = vector.shape_cast %20 : vector<1x8x256xf32> to vector<8x256xf32>
    %22 = arith.addf %19, %21 : vector<8x256xf32>
    %cst_24 = arith.constant 0.000000e+00 : f32
    %23 = vector.broadcast %cst_24 : f32 to vector<8x256xf32>
    %24 = arith.maximumf %22, %23 : vector<8x256xf32>
    %c0_25 = arith.constant 0 : index
    %c0_26 = arith.constant 0 : index
    %c0_27 = arith.constant 0 : index
    %25 = vector.load %arg5[%c0_25, %c0_26, %c0_27] : memref<1x8x256xf32, #tpu.memory_space<vmem>>, vector<1x8x256xf32>
    %26 = vector.shape_cast %25 : vector<1x8x256xf32> to vector<8x256xf32>
    %27 = vector.shape_cast %24 : vector<8x256xf32> to vector<1x8x256xf32>
    tpu.vector_store %arg5[%c0_25, %c0_26, %c0_27], %27 {strides = array<i32>} : memref<1x8x256xf32, #tpu.memory_space<vmem>>, vector<1x8x256xf32>,
    return
  }
  func.func @transform_0(%arg0: i32) -> (i32, i32, i32) {
    %c0_i32 = arith.constant 0 : i32
    %c0_i32_0 = arith.constant 0 : i32
    %c0_i32_1 = arith.constant 0 : i32
    return %arg0, %c0_i32, %c0_i32_0 : i32, i32, i32
  }
  func.func @transform_1(%arg0: i32) -> (i32, i32, i32) {
    %c0_i32 = arith.constant 0 : i32
    %c0_i32_0 = arith.constant 0 : i32
    %c0_i32_1 = arith.constant 0 : i32
    return %arg0, %c0_i32, %c0_i32_0 : i32, i32, i32
  }
  func.func @transform_2(%arg0: i32) -> (i32, i32) {
    %c0_i32 = arith.constant 0 : i32
    %c0_i32_0 = arith.constant 0 : i32
    %c0_i32_1 = arith.constant 0 : i32
    return %c0_i32, %c0_i32_0 : i32, i32
  }
  func.func @transform_3(%arg0: i32) -> (i32, i32) {
    %c0_i32 = arith.constant 0 : i32
    %c0_i32_0 = arith.constant 0 : i32
    %c0_i32_1 = arith.constant 0 : i32
    return %c0_i32, %c0_i32_0 : i32, i32
  }
  func.func @transform_4(%arg0: i32) -> (i32, i32, i32) {
    %c0_i32 = arith.constant 0 : i32
    %c0_i32_0 = arith.constant 0 : i32
    %c0_i32_1 = arith.constant 0 : i32
    return %arg0, %c0_i32, %c0_i32_0 : i32, i32, i32
  }
}

</mosaic_0001>

<llo_original>
// kernel: spatial_temporal_conv.5
$region0: #{spatial_temporal_conv.5}
  #allocation0 [shape = 'u32[]', space=smem, size = 0x4, offset = 0x4, fixed_abs, tag = 'smem constant byte address 0x4 - core index']
  #allocation1 [shape = 'u32[144,128]{1,0:T(1,128)}', space=vmem, size = 0x12000, scoped, tag = 'internal scratch']
  #allocation2 [shape = 'f32[8,384]{1,0:T(8,128)}', space=vmem, size = 0x3000, scoped, tag = 'scratch operand']
  %s0 = inlined_call_operand.vmem [shape: f32[2,8,256], index: 0, kind: input, shape index: {}]
  %s1 = inlined_call_operand.vmem [shape: f32[2,52,256], index: 1, kind: input, shape index: {}]
  %s2 = inlined_call_operand.vmem [shape: f32[8,72], index: 2, kind: input, shape index: {}]
  %s3 = inlined_call_operand.vmem [shape: f32[8,1], index: 3, kind: input, shape index: {}]
  %s4 = inlined_call_operand.vmem [shape: f32[2,8,256], index: 4, kind: output, shape index: {}]
  %s5 = sld [smem:[#allocation0]]
  $region49: #{spatial_temporal_conv.5} parent=0
    _
  %s7 = ssub.s32 1, %s5
  %s8 = scalar_select 0, %s7, %s5
  loop: start=0, step=1, limit=4
  $region2: #{spatial_temporal_conv.5} parent=0 // loop_pre_header
    _
  $region3: #{spatial_temporal_conv.5} parent=0 // loop_header
    %s10 = sphi 0, %s14
    %p11 = scmp.ge.s32.totalorder %s10, 4
    %s20 = sphi 0, %s22
    %s23 = sphi 0, %s20
    %s24 = sphi 0, %s23
    %s40 = sphi 0, %s24
    %s46 = sphi 0, %s48
    %s49 = sphi 0, %s46
    %s50 = sphi 0, %s49
    %s66 = sphi 0, %s50
    %s70 = sphi 0, %s70
    %s72 = sphi 0, %s70
    %s73 = sphi 0, %s72
    %s87 = sphi 0, %s73
    %s91 = sphi 0, %s91
    %s93 = sphi 0, %s91
    %s94 = sphi 0, %s93
    %s108 = sphi 0, %s94
    %s114 = sphi 0, %s116
    %s117 = sphi 0, %s114
    %s118 = sphi 0, %s117
    %s134 = sphi 0, %s118
  $region4: #{spatial_temporal_conv.5} parent=0 // loop_header_branch
    %13 = sbr.rel (%p11) target = $region8
  $region5: #{spatial_temporal_conv.5} parent=0 // loop_body
    %s15 = ssub.s32 %s10, 1
    %s16 = ssub.s32 %s10, 2
    %s17 = sadd.s32 %s10, 1
    %s18 = ssub.s32 %s10, %s17
    %p19 = scmp.eq.s32.totalorder %s18, 0
    %s21 = sadd.s32 %s20, 1
    %s22 = scalar_select %p19, %s20, %s21
    %p25 = pneg %p19
    %p26 = scmp.eq.s32.totalorder %s10, 1
    %p27 = por %p25, %p26
    %p28 = scmp.ne.s32.totalorder %s20, %s23
    %p29 = scmp.eq.s32.totalorder %s10, 0
    %p30 = por %p28, %p29
    %p31 = scmp.ne.s32.totalorder %s20, %s23
    %p32 = scmp.eq.s32.totalorder %s15, 1
    %p33 = por %p31, %p32
    %p34 = scmp.ne.s32.totalorder %s23, %s24
    %p35 = scmp.eq.s32.totalorder %s15, 0
    %p36 = por %p34, %p35
    %p37 = scmp.ne.s32.totalorder %s23, %s24
    %p38 = scmp.eq.s32.totalorder %s16, 1
    %p39 = por %p37, %p38
    %p41 = scmp.ne.s32.totalorder %s24, %s40
    %p42 = scmp.eq.s32.totalorder %s16, 0
    %p43 = por %p41, %p42
    %s44 = ssub.s32 %s10, %s17
    %p45 = scmp.eq.s32.totalorder %s44, 0
    %s47 = sadd.s32 %s46, 1
    %s48 = scalar_select %p45, %s46, %s47
    %p51 = pneg %p45
    %p52 = scmp.eq.s32.totalorder %s10, 1
    %p53 = por %p51, %p52
    %p54 = scmp.ne.s32.totalorder %s46, %s49
    %p55 = scmp.eq.s32.totalorder %s10, 0
    %p56 = por %p54, %p55
    %p57 = scmp.ne.s32.totalorder %s46, %s49
    %p58 = scmp.eq.s32.totalorder %s15, 1
    %p59 = por %p57, %p58
    %p60 = scmp.ne.s32.totalorder %s49, %s50
    %p61 = scmp.eq.s32.totalorder %s15, 0
    %p62 = por %p60, %p61
    %p63 = scmp.ne.s32.totalorder %s49, %s50
    %p64 = scmp.eq.s32.totalorder %s16, 1
    %p65 = por %p63, %p64
    %p67 = scmp.ne.s32.totalorder %s50, %s66
    %p68 = scmp.eq.s32.totalorder %s16, 0
    %p69 = por %p67, %p68
    %s71 = sadd.s32 %s70, 1
    %p74 = scmp.eq.s32.totalorder %s10, 1
    %p75 = scmp.ne.s32.totalorder %s70, %s72
    %p76 = scmp.eq.s32.totalorder %s10, 0
    %p77 = por %p75, %p76
    %p78 = scmp.ne.s32.totalorder %s70, %s72
    %p79 = scmp.eq.s32.totalorder %s15, 1
    %p80 = por %p78, %p79
    %p81 = scmp.ne.s32.totalorder %s72, %s73
    %p82 = scmp.eq.s32.totalorder %s15, 0
    %p83 = por %p81, %p82
    %p84 = scmp.ne.s32.totalorder %s72, %s73
    %p85 = scmp.eq.s32.totalorder %s16, 1
    %p86 = por %p84, %p85
    %p88 = scmp.ne.s32.totalorder %s73, %s87
    %p89 = scmp.eq.s32.totalorder %s16, 0
    %p90 = por %p88, %p89
    %s92 = sadd.s32 %s91, 1
    %p95 = scmp.eq.s32.totalorder %s10, 1
    %p96 = scmp.ne.s32.totalorder %s91, %s93
    %p97 = scmp.eq.s32.totalorder %s10, 0
    %p98 = por %p96, %p97
    %p99 = scmp.ne.s32.totalorder %s91, %s93
    %p100 = scmp.eq.s32.totalorder %s15, 1
    %p101 = por %p99, %p100
    %p102 = scmp.ne.s32.totalorder %s93, %s94
    %p103 = scmp.eq.s32.totalorder %s15, 0
    %p104 = por %p102, %p103
    %p105 = scmp.ne.s32.totalorder %s93, %s94
    %p106 = scmp.eq.s32.totalorder %s16, 1
    %p107 = por %p105, %p106
    %p109 = scmp.ne.s32.totalorder %s94, %s108
    %p110 = scmp.eq.s32.totalorder %s16, 0
    %p111 = por %p109, %p110
    %s112 = ssub.s32 %s10, %s17
    %p113 = scmp.eq.s32.totalorder %s112, 0
    %s115 = sadd.s32 %s114, 1
    %s116 = scalar_select %p113, %s114, %s115
    %p119 = pneg %p113
    %p120 = scmp.eq.s32.totalorder %s10, 1
    %p121 = por %p119, %p120
    %p122 = scmp.ne.s32.totalorder %s114, %s117
    %p123 = scmp.eq.s32.totalorder %s10, 0
    %p124 = por %p122, %p123
    %p125 = scmp.ne.s32.totalorder %s114, %s117
    %p126 = scmp.eq.s32.totalorder %s15, 1
    %p127 = por %p125, %p126
    %p128 = scmp.ne.s32.totalorder %s117, %s118
    %p129 = scmp.eq.s32.totalorder %s15, 0
    %p130 = por %p128, %p129
    %p131 = scmp.ne.s32.totalorder %s117, %s118
    %p132 = scmp.eq.s32.totalorder %s16, 1
    %p133 = por %p131, %p132
    %p135 = scmp.ne.s32.totalorder %s118, %s134
    %p136 = scmp.eq.s32.totalorder %s16, 0
    %p137 = por %p135, %p136
    %p138 = scmp.le.s32.totalorder 1, %s10
    %p139 = scmp.lt.s32.totalorder %s10, 3
    %p140 = pnand %p138, %p139
    %p141 = pneg %p140
    // Predicated region
    $region9: #{spatial_temporal_conv.5} parent=5 // pred_check
      _
    $region10: #{spatial_temporal_conv.5} parent=5 // pred_check_branch
      %143 = sbr.rel (%p140) target = $region12
    $region11: #{spatial_temporal_conv.5} parent=5 // pred_region
      %s144 = ssub.s32 %s10, 1
      // Predicated region
      $region13: #{spatial_temporal_conv.5} parent=11 // pred_check
        %p145 = pneg %p83
      $region14: #{spatial_temporal_conv.5} parent=11 // pred_check_branch
        %147 = sbr.rel (%p145) target = $region16
      $region15: #{spatial_temporal_conv.5} parent=11 // pred_region
        _
      $region16: #{spatial_temporal_conv.5} parent=11 // pred_fallthru
        _
      // Predicated region
      $region17: #{spatial_temporal_conv.5} parent=11 // pred_check
        %p148 = pneg %p104
      $region18: #{spatial_temporal_conv.5} parent=11 // pred_check_branch
        %150 = sbr.rel (%p148) target = $region20
      $region19: #{spatial_temporal_conv.5} parent=11 // pred_region
        _
      $region20: #{spatial_temporal_conv.5} parent=11 // pred_fallthru
        _
    $region12: #{spatial_temporal_conv.5} parent=5 // pred_fallthru
      _
    %p151 = scmp.lt.s32.totalorder %s10, 2
    // Predicated region
    $region21: #{spatial_temporal_conv.5} parent=5 // pred_check
      %p152 = pneg %p151
    $region22: #{spatial_temporal_conv.5} parent=5 // pred_check_branch
      %154 = sbr.rel (%p152) target = $region24
    $region23: #{spatial_temporal_conv.5} parent=5 // pred_region
      // Predicated region
      $region25: #{spatial_temporal_conv.5} parent=23 // pred_check
        %p155 = pneg %p30
      $region26: #{spatial_temporal_conv.5} parent=23 // pred_check_branch
        %157 = sbr.rel (%p155) target = $region28
      $region27: #{spatial_temporal_conv.5} parent=23 // pred_region
        %p158 = scmp.lt.s32.totalorder %s10, 1
        %s159 = scalar_select %p158, %s10, 1
        %s160 = smul.addr %s159, 2
        %s161 = smul.addr %s160, 8
        %s162 = scalar_lea.vmem %s0, %s161
      $region28: #{spatial_temporal_conv.5} parent=23 // pred_fallthru
        _
      // Predicated region
      $region29: #{spatial_temporal_conv.5} parent=23 // pred_check
        %p163 = pneg %p56
      $region30: #{spatial_temporal_conv.5} parent=23 // pred_check_branch
        %165 = sbr.rel (%p163) target = $region32
      $region31: #{spatial_temporal_conv.5} parent=23 // pred_region
        %p166 = scmp.lt.s32.totalorder %s10, 1
        %s167 = scalar_select %p166, %s10, 1
        %s168 = smul.addr %s167, 14
        %s169 = smul.addr %s168, 8
        %s170 = scalar_lea.vmem %s1, %s169
      $region32: #{spatial_temporal_conv.5} parent=23 // pred_fallthru
        _
    $region24: #{spatial_temporal_conv.5} parent=5 // pred_fallthru
      _
    %p171 = scmp.le.s32.totalorder 1, %s10
    %p172 = scmp.lt.s32.totalorder %s10, 3
    %p173 = pnand %p171, %p172
    %p174 = pneg %p173
    // Predicated region
    $region33: #{spatial_temporal_conv.5} parent=5 // pred_check
      _
    $region34: #{spatial_temporal_conv.5} parent=5 // pred_check_branch
      %176 = sbr.rel (%p173) target = $region36
    $region35: #{spatial_temporal_conv.5} parent=5 // pred_region
      %s177 = ssub.s32 %s10, 1
      %p178 = scmp.lt.s32.totalorder %s15, 1
      %s179 = scalar_select %p178, %s15, 1
      %s180 = smul.addr %s179, 2
      %s181 = smul.addr %s180, 8
      %s182 = scalar_lea.vmem %s0, %s181
      %p183 = pneg %p36
      %p184 = pneg %p33
      %p185 = scmp.lt.s32.totalorder %s15, 1
      %s186 = scalar_select %p185, %s15, 1
      %s187 = smul.addr %s186, 14
      %s188 = smul.addr %s187, 8
      %s189 = scalar_lea.vmem %s1, %s188
      %p190 = pneg %p62
      %p191 = pneg %p59
      %p192 = pneg %p83
      %p193 = pneg %p80
      %p194 = pneg %p104
      %p195 = pneg %p101
      %p196 = pneg %p130
      %p197 = pneg %p127
      %p198 = scmp.lt.s32.totalorder %s15, 1
      %s199 = scalar_select %p198, %s15, 1
      %s200 = smul.addr %s199, 2
      %s201 = smul.addr %s200, 8
      %s202 = scalar_lea.vmem %s4, %s201
      %p203 = scmp.lt.s32.totalorder %s15, 1
      %s204 = scalar_select %p203, %s15, 1
      %s205 = smul.addr %s204, 2
      %s206 = smul.addr %s205, 8
      %s207 = scalar_lea.vmem %s0, %s206
      %p208 = scmp.lt.s32.totalorder %s15, 1
      %s209 = scalar_select %p208, %s15, 1
      %s210 = smul.addr %s209, 14
      %s211 = smul.addr %s210, 8
      %s212 = scalar_lea.vmem %s1, %s211
      %p213 = scmp.lt.s32.totalorder %s15, 1
      %s214 = scalar_select %p213, %s15, 1
      %s215 = smul.addr %s214, 2
      %s216 = smul.addr %s215, 8
      %s217 = scalar_lea.vmem %s4, %s216
      %218 = vst [vmem:[#allocation2] sm:$0xff] 0.0
      %219 = vst [vmem:[#allocation2 + $0x8] sm:$0xff] 0.0
      %220 = vst [vmem:[#allocation2 + $0x10] sm:$0xff] 0.0
      %v221 = vld [vmem:[%s207] sm:$0xff]
      %v222 = vld [vmem:[%s207 + $0x8] sm:$0xff]
      %225 = vrot.lane.b32.xlu0 %v221, 64
      %v226 = vpop.permute.xlu0 %225
      %227 = vrot.lane.b32.xlu0 %v222, 64
      %v228 = vpop.permute.xlu0 %227
      %vm229 = vcmask 523264
      %v230 = vsel %vm229, %v226, %v228
      %vm234 = vcmask 1048064
      %235 = vst.msk [vmem:[#allocation2] sm:$0xff] %vm234, %v226
      %236 = vst [vmem:[#allocation2 + $0x8] sm:$0xff] %v230
      %237 = vst.msk [vmem:[#allocation2 + $0x10] sm:$0xff] %vm229, %v228
      %v238 = vld [vmem:[#allocation2] sm:$0xff]
      %v239 = vld [vmem:[#allocation2 + $0x8] sm:$0xff]
      %v240 = vld [vmem:[#allocation2] sm:$0xff]
      %v241 = vld [vmem:[#allocation2 + $0x8] sm:$0xff]
      %v242 = vld [vmem:[#allocation2 + $0x10] sm:$0xff]
      %246 = vrot.lane.b32.xlu0 %v240, 112
      %v247 = vpop.permute.xlu0 %246
      %248 = vrot.lane.b32.xlu0 %v241, 112
      %v249 = vpop.permute.xlu0 %248
      %250 = vrot.lane.b32.xlu0 %v242, 112
      %v251 = vpop.permute.xlu0 %250
      %vm252 = vcmask 916480
      %v253 = vsel %vm252, %v247, %v249
      %v254 = vsel %vm252, %v249, %v251
      %257 = vrot.lane.b32.xlu0 %v240, 96
      %v258 = vpop.permute.xlu0 %257
      %259 = vrot.lane.b32.xlu0 %v241, 96
      %v260 = vpop.permute.xlu0 %259
      %261 = vrot.lane.b32.xlu0 %v242, 96
      %v262 = vpop.permute.xlu0 %261
      %vm263 = vcmask 785408
      %v264 = vsel %vm263, %v258, %v260
      %v265 = vsel %vm263, %v260, %v262
      %268 = vrot.lane.b32.xlu0 %v240, 80
      %v269 = vpop.permute.xlu0 %268
      %270 = vrot.lane.b32.xlu0 %v241, 80
      %v271 = vpop.permute.xlu0 %270
      %272 = vrot.lane.b32.xlu0 %v242, 80
      %v273 = vpop.permute.xlu0 %272
      %vm274 = vcmask 654336
      %v275 = vsel %vm274, %v269, %v271
      %v276 = vsel %vm274, %v271, %v273
      %279 = vrot.lane.b32.xlu0 %v240, 64
      %v280 = vpop.permute.xlu0 %279
      %281 = vrot.lane.b32.xlu0 %v241, 64
      %v282 = vpop.permute.xlu0 %281
      %283 = vrot.lane.b32.xlu0 %v242, 64
      %v284 = vpop.permute.xlu0 %283
      %v285 = vsel %vm229, %v280, %v282
      %v286 = vsel %vm229, %v282, %v284
      %289 = vrot.lane.b32.xlu0 %v240, 48
      %v290 = vpop.permute.xlu0 %289
      %291 = vrot.lane.b32.xlu0 %v241, 48
      %v292 = vpop.permute.xlu0 %291
      %293 = vrot.lane.b32.xlu0 %v242, 48
      %v294 = vpop.permute.xlu0 %293
      %vm295 = vcmask 392192
      %v296 = vsel %vm295, %v290, %v292
      %v297 = vsel %vm295, %v292, %v294
      %300 = vrot.lane.b32.xlu0 %v240, 32
      %v301 = vpop.permute.xlu0 %300
      %302 = vrot.lane.b32.xlu0 %v241, 32
      %v303 = vpop.permute.xlu0 %302
      %304 = vrot.lane.b32.xlu0 %v242, 32
      %v305 = vpop.permute.xlu0 %304
      %vm306 = vcmask 261120
      %v307 = vsel %vm306, %v301, %v303
      %v308 = vsel %vm306, %v303, %v305
      %311 = vrot.lane.b32.xlu0 %v240, 16
      %v312 = vpop.permute.xlu0 %311
      %313 = vrot.lane.b32.xlu0 %v241, 16
      %v314 = vpop.permute.xlu0 %313
      %315 = vrot.lane.b32.xlu0 %v242, 16
      %v316 = vpop.permute.xlu0 %315
      %vm317 = vcmask 130048
      %v318 = vsel %vm317, %v312, %v314
      %v319 = vsel %vm317, %v314, %v316
      %v322 = vld [vmem:[%s2] sm:$0xff]
      %v323 = vld [vmem:[%s3] sm:$0xff]
      %325 = vset.pattern.permute.xlu0 0
      %326 = vperm.xlu0 %325, %v323
      %v327 = vpop.permute.xlu0 %326
      %vm329 = vcmask 588800
      %v331 = vsel %vm329, %v322, 0
      %333 = vmatprep.subr.mxu0 %v239
      %334 = vmatpush1.msra.mxu0 %v238
      %335 = vmatprep.subr.mxu0 %v254
      %336 = vmatpush1.msra.mxu0 %v253
      %337 = vmatprep.subr.mxu0 %v265
      %338 = vmatpush1.msra.mxu0 %v264
      %339 = vmatprep.subr.mxu0 %v276
      %340 = vmatpush1.msra.mxu0 %v275
      %341 = vmatprep.subr.mxu0 %v286
      %342 = vmatpush1.msra.mxu0 %v285
      %343 = vmatprep.subr.mxu0 %v297
      %344 = vmatpush1.msra.mxu0 %v296
      %345 = vmatprep.subr.mxu0 %v308
      %346 = vmatpush1.msra.mxu0 %v307
      %347 = vmatprep.subr.mxu0 %v319
      %348 = vmatpush1.msra.mxu0 %v318
      %349 = vmatprep.subr.mxu0 %v242
      %350 = vmatpush1.msra.mxu0 %v241
      %351 = vmatprep.subr.mxu0 0.0
      %352 = vmatpush1.msra.mxu0 0.0
      %353 = vmatprep.subr.mxu0 0.0
      %354 = vmatpush1.msra.mxu0 0.0
      %355 = vmatprep.subr.mxu0 0.0
      %356 = vmatpush1.msra.mxu0 0.0
      %357 = vmatprep.subr.mxu0 0.0
      %358 = vmatpush1.msra.mxu0 0.0
      %359 = vmatprep.subr.mxu0 0.0
      %360 = vmatpush1.msra.mxu0 0.0
      %361 = vmatprep.subr.mxu0 0.0
      %362 = vmatpush1.msra.mxu0 0.0
      %363 = vmatprep.subr.mxu0 0.0
      %364 = vmatpush1.msra.mxu0 0.0
      %365 = vmatprep.subr.mxu0 0.0
      %366 = vmatpush1.msra.mxu0 0.0
      %367 = vmatprep.subr.mxu0 0.0
      %368 = vmatpush1.msra.mxu0 0.0
      %369 = vmatprep.subr.mxu0 0.0
      %370 = vmatpush1.msra.mxu0 0.0
      %371 = vmatprep.subr.mxu0 0.0
      %372 = vmatpush1.msra.mxu0 0.0
      %373 = vmatprep.subr.mxu0 0.0
      %374 = vmatpush1.msra.mxu0 0.0
      %375 = vmatprep.subr.mxu0 0.0
      %376 = vmatpush1.msra.mxu0 0.0
      %377 = vmatprep.subr.mxu0 0.0
      %378 = vmatpush1.msra.mxu0 0.0
      %379 = vmatprep.subr.mxu0 0.0
      %380 = vmatpush1.msra.mxu0 0.0
      %381 = vmatprep.subr.mxu0 0.0
      %382 = vmatpush1.msra.mxu0 0.0
      %383 = vmatprep.subr.mxu0 0.0
      %384 = vmatpush1.msra.mxu0 0.0
      %385 = vmatprep.subr.mxu0 0.0
      %386 = vmatpush1.msra.mxu0 0.0
      %387 = vmatprep.subr.mxu0 0.0
      %388 = vmatpush1.msra.mxu0 0.0
      %389 = vmatprep.subr.mxu0 0.0
      %390 = vmatpush1.msra.mxu0 0.0
      %391 = vmatprep.subr.mxu0 0.0
      %392 = vmatpush1.msra.mxu0 0.0
      %393 = vmatprep.subr.mxu0 0.0
      %394 = vmatpush1.msra.mxu0 0.0
      %395 = vmatprep.subr.mxu0 0.0
      %396 = vmatpush1.msra.mxu0 0.0
      %397 = vmatprep.mubr.f32.mxu0 0.0
      %398 = vmatmul.mubr.f32.gmra.mrb[0].mxu0 %v331
      %v399 = vpop.f32.mrb[0].mxu0
      %v400 = vadd.f32 %v327, %v399
      %v401 = vpop.f32.mrb[0].mxu0
      %v402 = vadd.f32 %v327, %v401
      %403 = vdwg.mxu0
      %v404 = vld [vmem:[%s212 + $0x40] sm:$0xff]
      %v405 = vld [vmem:[%s212 + $0x48] sm:$0xff]
      %v406 = vadd.f32 %v400, %v404
      %v407 = vadd.f32 %v402, %v405
      %v408 = vmax.f32 %v406, 0.0
      %v409 = vmax.f32 %v407, 0.0
      %410 = vst [vmem:[%s217] sm:$0xff] %v408
      %411 = vst [vmem:[%s217 + $0x8] sm:$0xff] %v409
      %p412 = scmp.lt.s32.totalorder %s15, 1
      %s413 = scalar_select %p412, %s15, 1
      %s414 = smul.addr %s413, 2
      %s415 = smul.addr %s414, 8
      %s416 = scalar_lea.vmem %s4, %s415
      // Predicated region
      $region37: #{spatial_temporal_conv.5} parent=35 // pred_check
        %p417 = pneg %p127
      $region38: #{spatial_temporal_conv.5} parent=35 // pred_check_branch
        %419 = sbr.rel (%p417) target = $region40
      $region39: #{spatial_temporal_conv.5} parent=35 // pred_region
        _
      $region40: #{spatial_temporal_conv.5} parent=35 // pred_fallthru
        _
    $region36: #{spatial_temporal_conv.5} parent=5 // pred_fallthru
      _
    %p420 = scmp.le.s32.totalorder 2, %s10
    // Predicated region
    $region41: #{spatial_temporal_conv.5} parent=5 // pred_check
      %p421 = pneg %p420
    $region42: #{spatial_temporal_conv.5} parent=5 // pred_check_branch
      %423 = sbr.rel (%p421) target = $region44
    $region43: #{spatial_temporal_conv.5} parent=5 // pred_region
      %s424 = ssub.s32 %s10, 2
      // Predicated region
      $region45: #{spatial_temporal_conv.5} parent=43 // pred_check
        %p425 = pneg %p133
      $region46: #{spatial_temporal_conv.5} parent=43 // pred_check_branch
        %427 = sbr.rel (%p425) target = $region48
      $region47: #{spatial_temporal_conv.5} parent=43 // pred_region
        %p428 = scmp.lt.s32.totalorder %s16, 1
        %s429 = scalar_select %p428, %s16, 1
        %s430 = smul.addr %s429, 2
        %s431 = smul.addr %s430, 8
        %s432 = scalar_lea.vmem %s4, %s431
      $region48: #{spatial_temporal_conv.5} parent=43 // pred_fallthru
        _
    $region44: #{spatial_temporal_conv.5} parent=5 // pred_fallthru
      _
  $region6: #{spatial_temporal_conv.5} parent=0 // loop_footer
    %s14 = sadd.s32 1, %s10
  $region7: #{spatial_temporal_conv.5} parent=0 // loop_footer_branch
    %9 = sbr.rel target = $region3
  $region8: #{spatial_temporal_conv.5} parent=0 // loop_exit
    _

// kernel: spatial_temporal_conv.3
$region0: #{spatial_temporal_conv.3}
  #allocation0 [shape = 'u32[]', space=smem, size = 0x4, offset = 0x4, fixed_abs, tag = 'smem constant byte address 0x4 - core index']
  #allocation1 [shape = 'u32[144,128]{1,0:T(1,128)}', space=vmem, size = 0x12000, scoped, tag = 'internal scratch']
  %s0 = inlined_call_operand.vmem [shape: f32[2,4,256], index: 0, kind: input, shape index: {}]
  %s1 = inlined_call_operand.vmem [shape: f32[52,4], index: 1, kind: input, shape index: {}]
  %s2 = inlined_call_operand.vmem [shape: f32[52,1], index: 2, kind: input, shape index: {}]
  %s3 = inlined_call_operand.vmem [shape: f32[2,52,256], index: 3, kind: output, shape index: {}]
  %s4 = sld [smem:[#allocation0]]
  $region45: #{spatial_temporal_conv.3} parent=0
    _
  %s6 = ssub.s32 1, %s4
  %s7 = scalar_select 0, %s6, %s4
  loop: start=0, step=1, limit=4
  $region2: #{spatial_temporal_conv.3} parent=0 // loop_pre_header
    _
  $region3: #{spatial_temporal_conv.3} parent=0 // loop_header
    %s9 = sphi 0, %s13
    %p10 = scmp.ge.s32.totalorder %s9, 4
    %s19 = sphi 0, %s21
    %s22 = sphi 0, %s19
    %s23 = sphi 0, %s22
    %s39 = sphi 0, %s23
    %s43 = sphi 0, %s43
    %s45 = sphi 0, %s43
    %s46 = sphi 0, %s45
    %s60 = sphi 0, %s46
    %s64 = sphi 0, %s64
    %s66 = sphi 0, %s64
    %s67 = sphi 0, %s66
    %s81 = sphi 0, %s67
    %s87 = sphi 0, %s89
    %s90 = sphi 0, %s87
    %s91 = sphi 0, %s90
    %s107 = sphi 0, %s91
  $region4: #{spatial_temporal_conv.3} parent=0 // loop_header_branch
    %12 = sbr.rel (%p10) target = $region8
  $region5: #{spatial_temporal_conv.3} parent=0 // loop_body
    %s14 = ssub.s32 %s9, 1
    %s15 = ssub.s32 %s9, 2
    %s16 = sadd.s32 %s9, 1
    %s17 = ssub.s32 %s9, %s16
    %p18 = scmp.eq.s32.totalorder %s17, 0
    %s20 = sadd.s32 %s19, 1
    %s21 = scalar_select %p18, %s19, %s20
    %p24 = pneg %p18
    %p25 = scmp.eq.s32.totalorder %s9, 1
    %p26 = por %p24, %p25
    %p27 = scmp.ne.s32.totalorder %s19, %s22
    %p28 = scmp.eq.s32.totalorder %s9, 0
    %p29 = por %p27, %p28
    %p30 = scmp.ne.s32.totalorder %s19, %s22
    %p31 = scmp.eq.s32.totalorder %s14, 1
    %p32 = por %p30, %p31
    %p33 = scmp.ne.s32.totalorder %s22, %s23
    %p34 = scmp.eq.s32.totalorder %s14, 0
    %p35 = por %p33, %p34
    %p36 = scmp.ne.s32.totalorder %s22, %s23
    %p37 = scmp.eq.s32.totalorder %s15, 1
    %p38 = por %p36, %p37
    %p40 = scmp.ne.s32.totalorder %s23, %s39
    %p41 = scmp.eq.s32.totalorder %s15, 0
    %p42 = por %p40, %p41
    %s44 = sadd.s32 %s43, 1
    %p47 = scmp.eq.s32.totalorder %s9, 1
    %p48 = scmp.ne.s32.totalorder %s43, %s45
    %p49 = scmp.eq.s32.totalorder %s9, 0
    %p50 = por %p48, %p49
    %p51 = scmp.ne.s32.totalorder %s43, %s45
    %p52 = scmp.eq.s32.totalorder %s14, 1
    %p53 = por %p51, %p52
    %p54 = scmp.ne.s32.totalorder %s45, %s46
    %p55 = scmp.eq.s32.totalorder %s14, 0
    %p56 = por %p54, %p55
    %p57 = scmp.ne.s32.totalorder %s45, %s46
    %p58 = scmp.eq.s32.totalorder %s15, 1
    %p59 = por %p57, %p58
    %p61 = scmp.ne.s32.totalorder %s46, %s60
    %p62 = scmp.eq.s32.totalorder %s15, 0
    %p63 = por %p61, %p62
    %s65 = sadd.s32 %s64, 1
    %p68 = scmp.eq.s32.totalorder %s9, 1
    %p69 = scmp.ne.s32.totalorder %s64, %s66
    %p70 = scmp.eq.s32.totalorder %s9, 0
    %p71 = por %p69, %p70
    %p72 = scmp.ne.s32.totalorder %s64, %s66
    %p73 = scmp.eq.s32.totalorder %s14, 1
    %p74 = por %p72, %p73
    %p75 = scmp.ne.s32.totalorder %s66, %s67
    %p76 = scmp.eq.s32.totalorder %s14, 0
    %p77 = por %p75, %p76
    %p78 = scmp.ne.s32.totalorder %s66, %s67
    %p79 = scmp.eq.s32.totalorder %s15, 1
    %p80 = por %p78, %p79
    %p82 = scmp.ne.s32.totalorder %s67, %s81
    %p83 = scmp.eq.s32.totalorder %s15, 0
    %p84 = por %p82, %p83
    %s85 = ssub.s32 %s9, %s16
    %p86 = scmp.eq.s32.totalorder %s85, 0
    %s88 = sadd.s32 %s87, 1
    %s89 = scalar_select %p86, %s87, %s88
    %p92 = pneg %p86
    %p93 = scmp.eq.s32.totalorder %s9, 1
    %p94 = por %p92, %p93
    %p95 = scmp.ne.s32.totalorder %s87, %s90
    %p96 = scmp.eq.s32.totalorder %s9, 0
    %p97 = por %p95, %p96
    %p98 = scmp.ne.s32.totalorder %s87, %s90
    %p99 = scmp.eq.s32.totalorder %s14, 1
    %p100 = por %p98, %p99
    %p101 = scmp.ne.s32.totalorder %s90, %s91
    %p102 = scmp.eq.s32.totalorder %s14, 0
    %p103 = por %p101, %p102
    %p104 = scmp.ne.s32.totalorder %s90, %s91
    %p105 = scmp.eq.s32.totalorder %s15, 1
    %p106 = por %p104, %p105
    %p108 = scmp.ne.s32.totalorder %s91, %s107
    %p109 = scmp.eq.s32.totalorder %s15, 0
    %p110 = por %p108, %p109
    %p111 = scmp.le.s32.totalorder 1, %s9
    %p112 = scmp.lt.s32.totalorder %s9, 3
    %p113 = pnand %p111, %p112
    %p114 = pneg %p113
    // Predicated region
    $region9: #{spatial_temporal_conv.3} parent=5 // pred_check
      _
    $region10: #{spatial_temporal_conv.3} parent=5 // pred_check_branch
      %116 = sbr.rel (%p113) target = $region12
    $region11: #{spatial_temporal_conv.3} parent=5 // pred_region
      %s117 = ssub.s32 %s9, 1
      // Predicated region
      $region13: #{spatial_temporal_conv.3} parent=11 // pred_check
        %p118 = pneg %p56
      $region14: #{spatial_temporal_conv.3} parent=11 // pred_check_branch
        %120 = sbr.rel (%p118) target = $region16
      $region15: #{spatial_temporal_conv.3} parent=11 // pred_region
        _
      $region16: #{spatial_temporal_conv.3} parent=11 // pred_fallthru
        _
      // Predicated region
      $region17: #{spatial_temporal_conv.3} parent=11 // pred_check
        %p121 = pneg %p77
      $region18: #{spatial_temporal_conv.3} parent=11 // pred_check_branch
        %123 = sbr.rel (%p121) target = $region20
      $region19: #{spatial_temporal_conv.3} parent=11 // pred_region
        _
      $region20: #{spatial_temporal_conv.3} parent=11 // pred_fallthru
        _
    $region12: #{spatial_temporal_conv.3} parent=5 // pred_fallthru
      _
    %p124 = scmp.lt.s32.totalorder %s9, 2
    // Predicated region
    $region21: #{spatial_temporal_conv.3} parent=5 // pred_check
      %p125 = pneg %p124
    $region22: #{spatial_temporal_conv.3} parent=5 // pred_check_branch
      %127 = sbr.rel (%p125) target = $region24
    $region23: #{spatial_temporal_conv.3} parent=5 // pred_region
      // Predicated region
      $region25: #{spatial_temporal_conv.3} parent=23 // pred_check
        %p128 = pneg %p29
      $region26: #{spatial_temporal_conv.3} parent=23 // pred_check_branch
        %130 = sbr.rel (%p128) target = $region28
      $region27: #{spatial_temporal_conv.3} parent=23 // pred_region
        %p131 = scmp.lt.s32.totalorder %s9, 1
        %s132 = scalar_select %p131, %s9, 1
        %s133 = smul.addr %s132, 2
        %s134 = smul.addr %s133, 4
        %s135 = scalar_lea.vmem %s0, %s134
      $region28: #{spatial_temporal_conv.3} parent=23 // pred_fallthru
        _
    $region24: #{spatial_temporal_conv.3} parent=5 // pred_fallthru
      _
    %p136 = scmp.le.s32.totalorder 1, %s9
    %p137 = scmp.lt.s32.totalorder %s9, 3
    %p138 = pnand %p136, %p137
    %p139 = pneg %p138
    // Predicated region
    $region29: #{spatial_temporal_conv.3} parent=5 // pred_check
      _
    $region30: #{spatial_temporal_conv.3} parent=5 // pred_check_branch
      %141 = sbr.rel (%p138) target = $region32
    $region31: #{spatial_temporal_conv.3} parent=5 // pred_region
      %s142 = ssub.s32 %s9, 1
      %p143 = scmp.lt.s32.totalorder %s14, 1
      %s144 = scalar_select %p143, %s14, 1
      %s145 = smul.addr %s144, 2
      %s146 = smul.addr %s145, 4
      %s147 = scalar_lea.vmem %s0, %s146
      %p148 = pneg %p35
      %p149 = pneg %p32
      %p150 = pneg %p56
      %p151 = pneg %p53
      %p152 = pneg %p77
      %p153 = pneg %p74
      %p154 = pneg %p103
      %p155 = pneg %p100
      %p156 = scmp.lt.s32.totalorder %s14, 1
      %s157 = scalar_select %p156, %s14, 1
      %s158 = smul.addr %s157, 14
      %s159 = smul.addr %s158, 8
      %s160 = scalar_lea.vmem %s3, %s159
      %p161 = scmp.lt.s32.totalorder %s14, 1
      %s162 = scalar_select %p161, %s14, 1
      %s163 = smul.addr %s162, 2
      %s164 = smul.addr %s163, 4
      %s165 = scalar_lea.vmem %s0, %s164
      %p166 = scmp.lt.s32.totalorder %s14, 1
      %s167 = scalar_select %p166, %s14, 1
      %s168 = smul.addr %s167, 14
      %s169 = smul.addr %s168, 8
      %s170 = scalar_lea.vmem %s3, %s169
      %v171 = vld [vmem:[%s1] sm:$0xff]
      %v172 = vld [vmem:[%s1 + $0x8] sm:$0xff]
      %v173 = vld [vmem:[%s1 + $0x10] sm:$0xff]
      %v174 = vld [vmem:[%s1 + $0x18] sm:$0xff]
      %v175 = vld [vmem:[%s1 + $0x20] sm:$0xff]
      %v176 = vld [vmem:[%s1 + $0x28] sm:$0xff]
      %v177 = vld [vmem:[%s1 + $0x30] sm:$0xf]
      %v178 = vld [vmem:[%s165] sm:$0xff]
      %v179 = vld [vmem:[%s2] sm:$0xff]
      %v180 = vld [vmem:[%s2 + $0x8] sm:$0xff]
      %v181 = vld [vmem:[%s2 + $0x10] sm:$0xff]
      %v182 = vld [vmem:[%s2 + $0x18] sm:$0xff]
      %v183 = vld [vmem:[%s2 + $0x20] sm:$0xff]
      %v184 = vld [vmem:[%s2 + $0x28] sm:$0xff]
      %v185 = vld [vmem:[%s2 + $0x30] sm:$0xf]
      %187 = vset.pattern.permute.xlu0 0
      %188 = vperm.xlu0 %187, %v179
      %v189 = vpop.permute.xlu0 %188
      %192 = vset.pattern.permute.xlu0 0
      %193 = vperm.xlu0 %192, %v180
      %v194 = vpop.permute.xlu0 %193
      %197 = vset.pattern.permute.xlu0 0
      %198 = vperm.xlu0 %197, %v181
      %v199 = vpop.permute.xlu0 %198
      %202 = vset.pattern.permute.xlu0 0
      %203 = vperm.xlu0 %202, %v182
      %v204 = vpop.permute.xlu0 %203
      %207 = vset.pattern.permute.xlu0 0
      %208 = vperm.xlu0 %207, %v183
      %v209 = vpop.permute.xlu0 %208
      %212 = vset.pattern.permute.xlu0 0
      %213 = vperm.xlu0 %212, %v184
      %v214 = vpop.permute.xlu0 %213
      %217 = vset.pattern.permute.xlu0 0
      %218 = vperm.xlu0 %217, %v185
      %v219 = vpop.permute.xlu0 %218
      %v222 = vcombine.high %v178, %v178
      %vm223 = vcmask 31744
      %v225 = vsel %vm223, %v171, 0
      %v228 = vsel %vm223, %v172, 0
      %v231 = vsel %vm223, %v173, 0
      %v234 = vsel %vm223, %v174, 0
      %v237 = vsel %vm223, %v175, 0
      %v240 = vsel %vm223, %v176, 0
      %v243 = vsel %vm223, %v177, 0
      %vm245 = vcmask 1043456
      %v246 = vsel %vm245, %v178, 0
      %v248 = vsel %vm245, %v222, 0
      %250 = vmatprep.subr.mxu0 %v248
      %251 = vmatpush1.msra.mxu0 %v246
      %252 = vmatprep.subr.mxu0 0.0
      %253 = vmatpush1.msra.mxu0 0.0
      %254 = vmatprep.subr.mxu0 0.0
      %255 = vmatpush1.msra.mxu0 0.0
      %256 = vmatprep.subr.mxu0 0.0
      %257 = vmatpush1.msra.mxu0 0.0
      %258 = vmatprep.subr.mxu0 0.0
      %259 = vmatpush1.msra.mxu0 0.0
      %260 = vmatprep.subr.mxu0 0.0
      %261 = vmatpush1.msra.mxu0 0.0
      %262 = vmatprep.subr.mxu0 0.0
      %263 = vmatpush1.msra.mxu0 0.0
      %264 = vmatprep.subr.mxu0 0.0
      %265 = vmatpush1.msra.mxu0 0.0
      %266 = vmatprep.subr.mxu0 0.0
      %267 = vmatpush1.msra.mxu0 0.0
      %268 = vmatprep.subr.mxu0 0.0
      %269 = vmatpush1.msra.mxu0 0.0
      %270 = vmatprep.subr.mxu0 0.0
      %271 = vmatpush1.msra.mxu0 0.0
      %272 = vmatprep.subr.mxu0 0.0
      %273 = vmatpush1.msra.mxu0 0.0
      %274 = vmatprep.subr.mxu0 0.0
      %275 = vmatpush1.msra.mxu0 0.0
      %276 = vmatprep.subr.mxu0 0.0
      %277 = vmatpush1.msra.mxu0 0.0
      %278 = vmatprep.subr.mxu0 0.0
      %279 = vmatpush1.msra.mxu0 0.0
      %280 = vmatprep.subr.mxu0 0.0
      %281 = vmatpush1.msra.mxu0 0.0
      %282 = vmatprep.subr.mxu0 0.0
      %283 = vmatpush1.msra.mxu0 0.0
      %284 = vmatprep.subr.mxu0 0.0
      %285 = vmatpush1.msra.mxu0 0.0
      %286 = vmatprep.subr.mxu0 0.0
      %287 = vmatpush1.msra.mxu0 0.0
      %288 = vmatprep.subr.mxu0 0.0
      %289 = vmatpush1.msra.mxu0 0.0
      %290 = vmatprep.subr.mxu0 0.0
      %291 = vmatpush1.msra.mxu0 0.0
      %292 = vmatprep.subr.mxu0 0.0
      %293 = vmatpush1.msra.mxu0 0.0
      %294 = vmatprep.subr.mxu0 0.0
      %295 = vmatpush1.msra.mxu0 0.0
      %296 = vmatprep.subr.mxu0 0.0
      %297 = vmatpush1.msra.mxu0 0.0
      %298 = vmatprep.subr.mxu0 0.0
      %299 = vmatpush1.msra.mxu0 0.0
      %300 = vmatprep.subr.mxu0 0.0
      %301 = vmatpush1.msra.mxu0 0.0
      %302 = vmatprep.subr.mxu0 0.0
      %303 = vmatpush1.msra.mxu0 0.0
      %304 = vmatprep.subr.mxu0 0.0
      %305 = vmatpush1.msra.mxu0 0.0
      %306 = vmatprep.subr.mxu0 0.0
      %307 = vmatpush1.msra.mxu0 0.0
      %308 = vmatprep.subr.mxu0 0.0
      %309 = vmatpush1.msra.mxu0 0.0
      %310 = vmatprep.subr.mxu0 0.0
      %311 = vmatpush1.msra.mxu0 0.0
      %312 = vmatprep.subr.mxu0 0.0
      %313 = vmatpush1.msra.mxu0 0.0
      %314 = vmatprep.mubr.f32.mxu0 0.0
      %315 = vmatmul.mubr.f32.gmra.mrb[0].mxu0 %v225
      %v316 = vpop.f32.mrb[0].mxu0
      %v317 = vadd.f32 %v189, %v316
      %v318 = vpop.f32.mrb[0].mxu0
      %v319 = vadd.f32 %v189, %v318
      %320 = vmatprep.mubr.f32.mxu0 0.0
      %321 = vmatmul.mubr.f32.gmra.mrb[0].mxu0 %v228
      %v322 = vpop.f32.mrb[0].mxu0
      %v323 = vadd.f32 %v194, %v322
      %v324 = vpop.f32.mrb[0].mxu0
      %v325 = vadd.f32 %v194, %v324
      %326 = vmatprep.mubr.f32.mxu0 0.0
      %327 = vmatmul.mubr.f32.gmra.mrb[0].mxu0 %v231
      %v328 = vpop.f32.mrb[0].mxu0
      %v329 = vadd.f32 %v199, %v328
      %v330 = vpop.f32.mrb[0].mxu0
      %v331 = vadd.f32 %v199, %v330
      %332 = vmatprep.mubr.f32.mxu0 0.0
      %333 = vmatmul.mubr.f32.gmra.mrb[0].mxu0 %v234
      %v334 = vpop.f32.mrb[0].mxu0
      %v335 = vadd.f32 %v204, %v334
      %v336 = vpop.f32.mrb[0].mxu0
      %v337 = vadd.f32 %v204, %v336
      %338 = vmatprep.mubr.f32.mxu0 0.0
      %339 = vmatmul.mubr.f32.gmra.mrb[0].mxu0 %v237
      %v340 = vpop.f32.mrb[0].mxu0
      %v341 = vadd.f32 %v209, %v340
      %v342 = vpop.f32.mrb[0].mxu0
      %v343 = vadd.f32 %v209, %v342
      %344 = vmatprep.mubr.f32.mxu0 0.0
      %345 = vmatmul.mubr.f32.gmra.mrb[0].mxu0 %v240
      %v346 = vpop.f32.mrb[0].mxu0
      %v347 = vadd.f32 %v214, %v346
      %v348 = vpop.f32.mrb[0].mxu0
      %v349 = vadd.f32 %v214, %v348
      %350 = vmatprep.mubr.f32.mxu0 0.0
      %351 = vmatmul.mubr.f32.gmra.mrb[0].mxu0 %v243
      %v352 = vpop.f32.mrb[0].mxu0
      %v353 = vadd.f32 %v219, %v352
      %v354 = vpop.f32.mrb[0].mxu0
      %v355 = vadd.f32 %v219, %v354
      %356 = vdwg.mxu0
      %357 = vst [vmem:[%s170] sm:$0xff] %v317
      %358 = vst [vmem:[%s170 + $0x8] sm:$0xff] %v319
      %359 = vst [vmem:[%s170 + $0x10] sm:$0xff] %v323
      %360 = vst [vmem:[%s170 + $0x18] sm:$0xff] %v325
      %361 = vst [vmem:[%s170 + $0x20] sm:$0xff] %v329
      %362 = vst [vmem:[%s170 + $0x28] sm:$0xff] %v331
      %363 = vst [vmem:[%s170 + $0x30] sm:$0xff] %v335
      %364 = vst [vmem:[%s170 + $0x38] sm:$0xff] %v337
      %365 = vst [vmem:[%s170 + $0x40] sm:$0xff] %v341
      %366 = vst [vmem:[%s170 + $0x48] sm:$0xff] %v343
      %367 = vst [vmem:[%s170 + $0x50] sm:$0xff] %v347
      %368 = vst [vmem:[%s170 + $0x58] sm:$0xff] %v349
      %369 = vst [vmem:[%s170 + $0x60] sm:$0xf] %v353
      %370 = vst [vmem:[%s170 + $0x68] sm:$0xf] %v355
      %p371 = scmp.lt.s32.totalorder %s14, 1
      %s372 = scalar_select %p371, %s14, 1
      %s373 = smul.addr %s372, 14
      %s374 = smul.addr %s373, 8
      %s375 = scalar_lea.vmem %s3, %s374
      // Predicated region
      $region33: #{spatial_temporal_conv.3} parent=31 // pred_check
        %p376 = pneg %p100
      $region34: #{spatial_temporal_conv.3} parent=31 // pred_check_branch
        %378 = sbr.rel (%p376) target = $region36
      $region35: #{spatial_temporal_conv.3} parent=31 // pred_region
        _
      $region36: #{spatial_temporal_conv.3} parent=31 // pred_fallthru
        _
    $region32: #{spatial_temporal_conv.3} parent=5 // pred_fallthru
      _
    %p379 = scmp.le.s32.totalorder 2, %s9
    // Predicated region
    $region37: #{spatial_temporal_conv.3} parent=5 // pred_check
      %p380 = pneg %p379
    $region38: #{spatial_temporal_conv.3} parent=5 // pred_check_branch
      %382 = sbr.rel (%p380) target = $region40
    $region39: #{spatial_temporal_conv.3} parent=5 // pred_region
      %s383 = ssub.s32 %s9, 2
      // Predicated region
      $region41: #{spatial_temporal_conv.3} parent=39 // pred_check
        %p384 = pneg %p106
      $region42: #{spatial_temporal_conv.3} parent=39 // pred_check_branch
        %386 = sbr.rel (%p384) target = $region44
      $region43: #{spatial_temporal_conv.3} parent=39 // pred_region
        %p387 = scmp.lt.s32.totalorder %s15, 1
        %s388 = scalar_select %p387, %s15, 1
        %s389 = smul.addr %s388, 14
        %s390 = smul.addr %s389, 8
        %s391 = scalar_lea.vmem %s3, %s390
      $region44: #{spatial_temporal_conv.3} parent=39 // pred_fallthru
        _
    $region40: #{spatial_temporal_conv.3} parent=5 // pred_fallthru
      _
  $region6: #{spatial_temporal_conv.3} parent=0 // loop_footer
    %s13 = sadd.s32 1, %s9
  $region7: #{spatial_temporal_conv.3} parent=0 // loop_footer_branch
    %8 = sbr.rel target = $region3
  $region8: #{spatial_temporal_conv.3} parent=0 // loop_exit
    _

// kernel: spatial_temporal_conv.4
$region0: #{spatial_temporal_conv.4}
  #allocation0 [shape = 'u32[]', space=smem, size = 0x4, offset = 0x4, fixed_abs, tag = 'smem constant byte address 0x4 - core index']
  #allocation1 [shape = 'u32[144,128]{1,0:T(1,128)}', space=vmem, size = 0x12000, scoped, tag = 'internal scratch']
  %s0 = inlined_call_operand.vmem [shape: f32[2,832,16], index: 0, kind: input, shape index: {}]
  %s1 = inlined_call_operand.vmem [shape: f32[2,48,32], index: 1, kind: input, shape index: {}]
  %s2 = inlined_call_operand.vmem [shape: f32[48,16], index: 2, kind: input, shape index: {}]
  %s3 = inlined_call_operand.vmem [shape: f32[128,1], index: 3, kind: input, shape index: {}]
  %s4 = inlined_call_operand.vmem [shape: f32[2,128,16], index: 4, kind: output, shape index: {}]
  %s5 = sld [smem:[#allocation0]]
  $region49: #{spatial_temporal_conv.4} parent=0
    _
  %s7 = ssub.s32 1, %s5
  %s8 = scalar_select 0, %s7, %s5
  loop: start=0, step=1, limit=4
  $region2: #{spatial_temporal_conv.4} parent=0 // loop_pre_header
    _
  $region3: #{spatial_temporal_conv.4} parent=0 // loop_header
    %s10 = sphi 0, %s14
    %p11 = scmp.ge.s32.totalorder %s10, 4
    %s20 = sphi 0, %s22
    %s23 = sphi 0, %s20
    %s24 = sphi 0, %s23
    %s40 = sphi 0, %s24
    %s46 = sphi 0, %s48
    %s49 = sphi 0, %s46
    %s50 = sphi 0, %s49
    %s66 = sphi 0, %s50
    %s70 = sphi 0, %s70
    %s72 = sphi 0, %s70
    %s73 = sphi 0, %s72
    %s87 = sphi 0, %s73
    %s91 = sphi 0, %s91
    %s93 = sphi 0, %s91
    %s94 = sphi 0, %s93
    %s108 = sphi 0, %s94
    %s114 = sphi 0, %s116
    %s117 = sphi 0, %s114
    %s118 = sphi 0, %s117
    %s134 = sphi 0, %s118
  $region4: #{spatial_temporal_conv.4} parent=0 // loop_header_branch
    %13 = sbr.rel (%p11) target = $region8
  $region5: #{spatial_temporal_conv.4} parent=0 // loop_body
    %s15 = ssub.s32 %s10, 1
    %s16 = ssub.s32 %s10, 2
    %s17 = sadd.s32 %s10, 1
    %s18 = ssub.s32 %s10, %s17
    %p19 = scmp.eq.s32.totalorder %s18, 0
    %s21 = sadd.s32 %s20, 1
    %s22 = scalar_select %p19, %s20, %s21
    %p25 = pneg %p19
    %p26 = scmp.eq.s32.totalorder %s10, 1
    %p27 = por %p25, %p26
    %p28 = scmp.ne.s32.totalorder %s20, %s23
    %p29 = scmp.eq.s32.totalorder %s10, 0
    %p30 = por %p28, %p29
    %p31 = scmp.ne.s32.totalorder %s20, %s23
    %p32 = scmp.eq.s32.totalorder %s15, 1
    %p33 = por %p31, %p32
    %p34 = scmp.ne.s32.totalorder %s23, %s24
    %p35 = scmp.eq.s32.totalorder %s15, 0
    %p36 = por %p34, %p35
    %p37 = scmp.ne.s32.totalorder %s23, %s24
    %p38 = scmp.eq.s32.totalorder %s16, 1
    %p39 = por %p37, %p38
    %p41 = scmp.ne.s32.totalorder %s24, %s40
    %p42 = scmp.eq.s32.totalorder %s16, 0
    %p43 = por %p41, %p42
    %s44 = ssub.s32 %s10, %s17
    %p45 = scmp.eq.s32.totalorder %s44, 0
    %s47 = sadd.s32 %s46, 1
    %s48 = scalar_select %p45, %s46, %s47
    %p51 = pneg %p45
    %p52 = scmp.eq.s32.totalorder %s10, 1
    %p53 = por %p51, %p52
    %p54 = scmp.ne.s32.totalorder %s46, %s49
    %p55 = scmp.eq.s32.totalorder %s10, 0
    %p56 = por %p54, %p55
    %p57 = scmp.ne.s32.totalorder %s46, %s49
    %p58 = scmp.eq.s32.totalorder %s15, 1
    %p59 = por %p57, %p58
    %p60 = scmp.ne.s32.totalorder %s49, %s50
    %p61 = scmp.eq.s32.totalorder %s15, 0
    %p62 = por %p60, %p61
    %p63 = scmp.ne.s32.totalorder %s49, %s50
    %p64 = scmp.eq.s32.totalorder %s16, 1
    %p65 = por %p63, %p64
    %p67 = scmp.ne.s32.totalorder %s50, %s66
    %p68 = scmp.eq.s32.totalorder %s16, 0
    %p69 = por %p67, %p68
    %s71 = sadd.s32 %s70, 1
    %p74 = scmp.eq.s32.totalorder %s10, 1
    %p75 = scmp.ne.s32.totalorder %s70, %s72
    %p76 = scmp.eq.s32.totalorder %s10, 0
    %p77 = por %p75, %p76
    %p78 = scmp.ne.s32.totalorder %s70, %s72
    %p79 = scmp.eq.s32.totalorder %s15, 1
    %p80 = por %p78, %p79
    %p81 = scmp.ne.s32.totalorder %s72, %s73
    %p82 = scmp.eq.s32.totalorder %s15, 0
    %p83 = por %p81, %p82
    %p84 = scmp.ne.s32.totalorder %s72, %s73
    %p85 = scmp.eq.s32.totalorder %s16, 1
    %p86 = por %p84, %p85
    %p88 = scmp.ne.s32.totalorder %s73, %s87
    %p89 = scmp.eq.s32.totalorder %s16, 0
    %p90 = por %p88, %p89
    %s92 = sadd.s32 %s91, 1
    %p95 = scmp.eq.s32.totalorder %s10, 1
    %p96 = scmp.ne.s32.totalorder %s91, %s93
    %p97 = scmp.eq.s32.totalorder %s10, 0
    %p98 = por %p96, %p97
    %p99 = scmp.ne.s32.totalorder %s91, %s93
    %p100 = scmp.eq.s32.totalorder %s15, 1
    %p101 = por %p99, %p100
    %p102 = scmp.ne.s32.totalorder %s93, %s94
    %p103 = scmp.eq.s32.totalorder %s15, 0
    %p104 = por %p102, %p103
    %p105 = scmp.ne.s32.totalorder %s93, %s94
    %p106 = scmp.eq.s32.totalorder %s16, 1
    %p107 = por %p105, %p106
    %p109 = scmp.ne.s32.totalorder %s94, %s108
    %p110 = scmp.eq.s32.totalorder %s16, 0
    %p111 = por %p109, %p110
    %s112 = ssub.s32 %s10, %s17
    %p113 = scmp.eq.s32.totalorder %s112, 0
    %s115 = sadd.s32 %s114, 1
    %s116 = scalar_select %p113, %s114, %s115
    %p119 = pneg %p113
    %p120 = scmp.eq.s32.totalorder %s10, 1
    %p121 = por %p119, %p120
    %p122 = scmp.ne.s32.totalorder %s114, %s117
    %p123 = scmp.eq.s32.totalorder %s10, 0
    %p124 = por %p122, %p123
    %p125 = scmp.ne.s32.totalorder %s114, %s117
    %p126 = scmp.eq.s32.totalorder %s15, 1
    %p127 = por %p125, %p126
    %p128 = scmp.ne.s32.totalorder %s117, %s118
    %p129 = scmp.eq.s32.totalorder %s15, 0
    %p130 = por %p128, %p129
    %p131 = scmp.ne.s32.totalorder %s117, %s118
    %p132 = scmp.eq.s32.totalorder %s16, 1
    %p133 = por %p131, %p132
    %p135 = scmp.ne.s32.totalorder %s118, %s134
    %p136 = scmp.eq.s32.totalorder %s16, 0
    %p137 = por %p135, %p136
    %p138 = scmp.le.s32.totalorder 1, %s10
    %p139 = scmp.lt.s32.totalorder %s10, 3
    %p140 = pnand %p138, %p139
    %p141 = pneg %p140
    // Predicated region
    $region9: #{spatial_temporal_conv.4} parent=5 // pred_check
      _
    $region10: #{spatial_temporal_conv.4} parent=5 // pred_check_branch
      %143 = sbr.rel (%p140) target = $region12
    $region11: #{spatial_temporal_conv.4} parent=5 // pred_region
      %s144 = ssub.s32 %s10, 1
      // Predicated region
      $region13: #{spatial_temporal_conv.4} parent=11 // pred_check
        %p145 = pneg %p83
      $region14: #{spatial_temporal_conv.4} parent=11 // pred_check_branch
        %147 = sbr.rel (%p145) target = $region16
      $region15: #{spatial_temporal_conv.4} parent=11 // pred_region
        _
      $region16: #{spatial_temporal_conv.4} parent=11 // pred_fallthru
        _
      // Predicated region
      $region17: #{spatial_temporal_conv.4} parent=11 // pred_check
        %p148 = pneg %p104
      $region18: #{spatial_temporal_conv.4} parent=11 // pred_check_branch
        %150 = sbr.rel (%p148) target = $region20
      $region19: #{spatial_temporal_conv.4} parent=11 // pred_region
        _
      $region20: #{spatial_temporal_conv.4} parent=11 // pred_fallthru
        _
    $region12: #{spatial_temporal_conv.4} parent=5 // pred_fallthru
      _
    %p151 = scmp.lt.s32.totalorder %s10, 2
    // Predicated region
    $region21: #{spatial_temporal_conv.4} parent=5 // pred_check
      %p152 = pneg %p151
    $region22: #{spatial_temporal_conv.4} parent=5 // pred_check_branch
      %154 = sbr.rel (%p152) target = $region24
    $region23: #{spatial_temporal_conv.4} parent=5 // pred_region
      // Predicated region
      $region25: #{spatial_temporal_conv.4} parent=23 // pred_check
        %p155 = pneg %p30
      $region26: #{spatial_temporal_conv.4} parent=23 // pred_check_branch
        %157 = sbr.rel (%p155) target = $region28
      $region27: #{spatial_temporal_conv.4} parent=23 // pred_region
        %p158 = scmp.lt.s32.totalorder %s10, 1
        %s159 = scalar_select %p158, %s10, 1
        %s160 = smul.addr %s159, 104
        %s161 = smul.addr %s160, 8
        %s162 = scalar_lea.vmem %s0, %s161
      $region28: #{spatial_temporal_conv.4} parent=23 // pred_fallthru
        _
      // Predicated region
      $region29: #{spatial_temporal_conv.4} parent=23 // pred_check
        %p163 = pneg %p56
      $region30: #{spatial_temporal_conv.4} parent=23 // pred_check_branch
        %165 = sbr.rel (%p163) target = $region32
      $region31: #{spatial_temporal_conv.4} parent=23 // pred_region
        %p166 = scmp.lt.s32.totalorder %s10, 1
        %s167 = scalar_select %p166, %s10, 1
        %s168 = smul.addr %s167, 6
        %s169 = smul.addr %s168, 8
        %s170 = scalar_lea.vmem %s1, %s169
      $region32: #{spatial_temporal_conv.4} parent=23 // pred_fallthru
        _
    $region24: #{spatial_temporal_conv.4} parent=5 // pred_fallthru
      _
    %p171 = scmp.le.s32.totalorder 1, %s10
    %p172 = scmp.lt.s32.totalorder %s10, 3
    %p173 = pnand %p171, %p172
    %p174 = pneg %p173
    // Predicated region
    $region33: #{spatial_temporal_conv.4} parent=5 // pred_check
      _
    $region34: #{spatial_temporal_conv.4} parent=5 // pred_check_branch
      %176 = sbr.rel (%p173) target = $region36
    $region35: #{spatial_temporal_conv.4} parent=5 // pred_region
      %s177 = ssub.s32 %s10, 1
      %p178 = scmp.lt.s32.totalorder %s15, 1
      %s179 = scalar_select %p178, %s15, 1
      %s180 = smul.addr %s179, 104
      %s181 = smul.addr %s180, 8
      %s182 = scalar_lea.vmem %s0, %s181
      %p183 = pneg %p36
      %p184 = pneg %p33
      %p185 = scmp.lt.s32.totalorder %s15, 1
      %s186 = scalar_select %p185, %s15, 1
      %s187 = smul.addr %s186, 6
      %s188 = smul.addr %s187, 8
      %s189 = scalar_lea.vmem %s1, %s188
      %p190 = pneg %p62
      %p191 = pneg %p59
      %p192 = pneg %p83
      %p193 = pneg %p80
      %p194 = pneg %p104
      %p195 = pneg %p101
      %p196 = pneg %p130
      %p197 = pneg %p127
      %p198 = scmp.lt.s32.totalorder %s15, 1
      %s199 = scalar_select %p198, %s15, 1
      %s200 = smul.addr %s199, 16
      %s201 = smul.addr %s200, 8
      %s202 = scalar_lea.vmem %s4, %s201
      %p203 = scmp.lt.s32.totalorder %s15, 1
      %s204 = scalar_select %p203, %s15, 1
      %s205 = smul.addr %s204, 104
      %s206 = smul.addr %s205, 8
      %s207 = scalar_lea.vmem %s0, %s206
      %p208 = scmp.lt.s32.totalorder %s15, 1
      %s209 = scalar_select %p208, %s15, 1
      %s210 = smul.addr %s209, 6
      %s211 = smul.addr %s210, 8
      %s212 = scalar_lea.vmem %s1, %s211
      %p213 = scmp.lt.s32.totalorder %s15, 1
      %s214 = scalar_select %p213, %s15, 1
      %s215 = smul.addr %s214, 16
      %s216 = smul.addr %s215, 8
      %s217 = scalar_lea.vmem %s4, %s216
      %v218 = vld [vmem:[%s212] sm:$0xff]
      %v219 = vld [vmem:[%s212 + $0x8] sm:$0xff]
      %v220 = vld [vmem:[%s207 + $0x2e0] sm:$0xff]
      %v221 = vld [vmem:[%s207 + $0x2e8] sm:$0xff]
      %v222 = vld [vmem:[%s207 + $0x2f0] sm:$0xff]
      %v223 = vld [vmem:[%s207 + $0x2f8] sm:$0xff]
      %vm224 = vcmask 261120
      %v226 = vsel %vm224, %v218, 0
      %v229 = vsel %vm224, %v219, 0
      %231 = vmatprep.subr.mxu0 0.0
      %232 = vmatpush1.msra.mxu0 %v220
      %233 = vmatprep.subr.mxu0 0.0
      %234 = vmatpush1.msra.mxu0 %v221
      %235 = vmatprep.subr.mxu0 0.0
      %236 = vmatpush1.msra.mxu0 %v222
      %237 = vmatprep.subr.mxu0 0.0
      %238 = vmatpush1.msra.mxu0 %v223
      %239 = vmatprep.subr.mxu0 0.0
      %240 = vmatpush1.msra.mxu0 0.0
      %241 = vmatprep.subr.mxu0 0.0
      %242 = vmatpush1.msra.mxu0 0.0
      %243 = vmatprep.subr.mxu0 0.0
      %244 = vmatpush1.msra.mxu0 0.0
      %245 = vmatprep.subr.mxu0 0.0
      %246 = vmatpush1.msra.mxu0 0.0
      %247 = vmatprep.subr.mxu0 0.0
      %248 = vmatpush1.msra.mxu0 0.0
      %249 = vmatprep.subr.mxu0 0.0
      %250 = vmatpush1.msra.mxu0 0.0
      %251 = vmatprep.subr.mxu0 0.0
      %252 = vmatpush1.msra.mxu0 0.0
      %253 = vmatprep.subr.mxu0 0.0
      %254 = vmatpush1.msra.mxu0 0.0
      %255 = vmatprep.subr.mxu0 0.0
      %256 = vmatpush1.msra.mxu0 0.0
      %257 = vmatprep.subr.mxu0 0.0
      %258 = vmatpush1.msra.mxu0 0.0
      %259 = vmatprep.subr.mxu0 0.0
      %260 = vmatpush1.msra.mxu0 0.0
      %261 = vmatprep.subr.mxu0 0.0
      %262 = vmatpush1.msra.mxu0 0.0
      %263 = vmatprep.subr.mxu0 0.0
      %264 = vmatpush1.msra.mxu0 0.0
      %265 = vmatprep.subr.mxu0 0.0
      %266 = vmatpush1.msra.mxu0 0.0
      %267 = vmatprep.subr.mxu0 0.0
      %268 = vmatpush1.msra.mxu0 0.0
      %269 = vmatprep.subr.mxu0 0.0
      %270 = vmatpush1.msra.mxu0 0.0
      %271 = vmatprep.subr.mxu0 0.0
      %272 = vmatpush1.msra.mxu0 0.0
      %273 = vmatprep.subr.mxu0 0.0
      %274 = vmatpush1.msra.mxu0 0.0
      %275 = vmatprep.subr.mxu0 0.0
      %276 = vmatpush1.msra.mxu0 0.0
      %277 = vmatprep.subr.mxu0 0.0
      %278 = vmatpush1.msra.mxu0 0.0
      %279 = vmatprep.subr.mxu0 0.0
      %280 = vmatpush1.msra.mxu0 0.0
      %281 = vmatprep.subr.mxu0 0.0
      %282 = vmatpush1.msra.mxu0 0.0
      %283 = vmatprep.subr.mxu0 0.0
      %284 = vmatpush1.msra.mxu0 0.0
      %285 = vmatprep.subr.mxu0 0.0
      %286 = vmatpush1.msra.mxu0 0.0
      %287 = vmatprep.subr.mxu0 0.0
      %288 = vmatpush1.msra.mxu0 0.0
      %289 = vmatprep.subr.mxu0 0.0
      %290 = vmatpush1.msra.mxu0 0.0
      %291 = vmatprep.subr.mxu0 0.0
      %292 = vmatpush1.msra.mxu0 0.0
      %293 = vmatprep.subr.mxu0 0.0
      %294 = vmatpush1.msra.mxu0 0.0
      %295 = vmatprep.mubr.f32.mxu0 0.0
      %296 = vmatmul.mubr.f32.gmra.mrb[0].mxu0 %v226
      %v297 = vpop.f32.mrb[0].mxu0
      %v298 = vadd.f32 0.0, %v297
      %v299 = vpop.f32.mrb[0].mxu0
      %300 = vmatprep.mubr.f32.mxu0 0.0
      %301 = vmatmul.mubr.f32.gmra.mrb[0].mxu0 %v229
      %v302 = vpop.f32.mrb[0].mxu0
      %v303 = vadd.f32 0.0, %v302
      %v304 = vpop.f32.mrb[0].mxu0
      %305 = vdwg.mxu0
      %v306 = vmul.f32 %v298, 0.03125
      %v307 = vmul.f32 %v303, 0.03125
      %vm308 = vcmask 130048
      %v309 = vsel %vm308, %v306, -inf
      %v310 = vsel %vm308, %v307, -inf
      %v311 = vmax.f32 %v309, %v310
      %v312 = vrot.slane %v311, 4
      %v313 = vmax.f32 %v311, %v312
      %v314 = vrot.slane %v313, 2
      %v315 = vmax.f32 %v313, %v314
      %v316 = vrot.slane %v315, 1
      %v317 = vmax.f32 %v315, %v316
      %v318 = vsub.f32 %v306, %v317
      %v319 = vsub.f32 %v307, %v317
      %v320 = vmul.f32 %v318, 1.442695
      %v321 = vpow.pop %v320
      %v322 = vmul.f32 %v319, 1.442695
      %v323 = vpow.pop %v322
      %v324 = vsel %vm308, %v321, 0.0
      %v325 = vsel %vm308, %v323, 0.0
      %v326 = vadd.f32 %v324, %v325
      %v327 = vrot.slane %v326, 4
      %v328 = vadd.f32 %v326, %v327
      %v329 = vrot.slane %v328, 2
      %v330 = vadd.f32 %v328, %v329
      %v331 = vrot.slane %v330, 1
      %v332 = vadd.f32 %v330, %v331
      %v333 = vrcp.pop %v332
      %v334 = vmul.f32 %v321, %v333
      %v335 = vmul.f32 %v323, %v333
      %v336 = vld [vmem:[%s212 + $0x10] sm:$0xff]
      %v337 = vld [vmem:[%s212 + $0x18] sm:$0xff]
      %v338 = vld [vmem:[%s207 + $0x300] sm:$0xff]
      %v339 = vld [vmem:[%s207 + $0x308] sm:$0xff]
      %v340 = vld [vmem:[%s207 + $0x310] sm:$0xff]
      %v341 = vld [vmem:[%s207 + $0x318] sm:$0xff]
      %v343 = vsel %vm224, %v336, 0
      %v346 = vsel %vm224, %v337, 0
      %348 = vmatprep.subr.mxu0 0.0
      %349 = vmatpush1.msra.mxu0 %v338
      %350 = vmatprep.subr.mxu0 0.0
      %351 = vmatpush1.msra.mxu0 %v339
      %352 = vmatprep.subr.mxu0 0.0
      %353 = vmatpush1.msra.mxu0 %v340
      %354 = vmatprep.subr.mxu0 0.0
      %355 = vmatpush1.msra.mxu0 %v341
      %356 = vmatprep.subr.mxu0 0.0
      %357 = vmatpush1.msra.mxu0 0.0
      %358 = vmatprep.subr.mxu0 0.0
      %359 = vmatpush1.msra.mxu0 0.0
      %360 = vmatprep.subr.mxu0 0.0
      %361 = vmatpush1.msra.mxu0 0.0
      %362 = vmatprep.subr.mxu0 0.0
      %363 = vmatpush1.msra.mxu0 0.0
      %364 = vmatprep.subr.mxu0 0.0
      %365 = vmatpush1.msra.mxu0 0.0
      %366 = vmatprep.subr.mxu0 0.0
      %367 = vmatpush1.msra.mxu0 0.0
      %368 = vmatprep.subr.mxu0 0.0
      %369 = vmatpush1.msra.mxu0 0.0
      %370 = vmatprep.subr.mxu0 0.0
      %371 = vmatpush1.msra.mxu0 0.0
      %372 = vmatprep.subr.mxu0 0.0
      %373 = vmatpush1.msra.mxu0 0.0
      %374 = vmatprep.subr.mxu0 0.0
      %375 = vmatpush1.msra.mxu0 0.0
      %376 = vmatprep.subr.mxu0 0.0
      %377 = vmatpush1.msra.mxu0 0.0
      %378 = vmatprep.subr.mxu0 0.0
      %379 = vmatpush1.msra.mxu0 0.0
      %380 = vmatprep.subr.mxu0 0.0
      %381 = vmatpush1.msra.mxu0 0.0
      %382 = vmatprep.subr.mxu0 0.0
      %383 = vmatpush1.msra.mxu0 0.0
      %384 = vmatprep.subr.mxu0 0.0
      %385 = vmatpush1.msra.mxu0 0.0
      %386 = vmatprep.subr.mxu0 0.0
      %387 = vmatpush1.msra.mxu0 0.0
      %388 = vmatprep.subr.mxu0 0.0
      %389 = vmatpush1.msra.mxu0 0.0
      %390 = vmatprep.subr.mxu0 0.0
      %391 = vmatpush1.msra.mxu0 0.0
      %392 = vmatprep.subr.mxu0 0.0
      %393 = vmatpush1.msra.mxu0 0.0
      %394 = vmatprep.subr.mxu0 0.0
      %395 = vmatpush1.msra.mxu0 0.0
      %396 = vmatprep.subr.mxu0 0.0
      %397 = vmatpush1.msra.mxu0 0.0
      %398 = vmatprep.subr.mxu0 0.0
      %399 = vmatpush1.msra.mxu0 0.0
      %400 = vmatprep.subr.mxu0 0.0
      %401 = vmatpush1.msra.mxu0 0.0
      %402 = vmatprep.subr.mxu0 0.0
      %403 = vmatpush1.msra.mxu0 0.0
      %404 = vmatprep.subr.mxu0 0.0
      %405 = vmatpush1.msra.mxu0 0.0
      %406 = vmatprep.subr.mxu0 0.0
      %407 = vmatpush1.msra.mxu0 0.0
      %408 = vmatprep.subr.mxu0 0.0
      %409 = vmatpush1.msra.mxu0 0.0
      %410 = vmatprep.subr.mxu0 0.0
      %411 = vmatpush1.msra.mxu0 0.0
      %412 = vmatprep.mubr.f32.mxu0 0.0
      %413 = vmatmul.mubr.f32.gmra.mrb[0].mxu0 %v343
      %v414 = vpop.f32.mrb[0].mxu0
      %v415 = vadd.f32 0.0, %v414
      %v416 = vpop.f32.mrb[0].mxu0
      %417 = vmatprep.mubr.f32.mxu0 0.0
      %418 = vmatmul.mubr.f32.gmra.mrb[0].mxu0 %v346
      %v419 = vpop.f32.mrb[0].mxu0
      %v420 = vadd.f32 0.0, %v419
      %v421 = vpop.f32.mrb[0].mxu0
      %422 = vdwg.mxu0
      %v423 = vmul.f32 %v415, 0.03125
      %v424 = vmul.f32 %v420, 0.03125
      %v425 = vsel %vm308, %v423, -inf
      %v426 = vsel %vm308, %v424, -inf
      %v427 = vmax.f32 %v425, %v426
      %v428 = vrot.slane %v427, 4
      %v429 = vmax.f32 %v427, %v428
      %v430 = vrot.slane %v429, 2
      %v431 = vmax.f32 %v429, %v430
      %v432 = vrot.slane %v431, 1
      %v433 = vmax.f32 %v431, %v432
      %v434 = vsub.f32 %v423, %v433
      %v435 = vsub.f32 %v424, %v433
      %v436 = vmul.f32 %v434, 1.442695
      %v437 = vpow.pop %v436
      %v438 = vmul.f32 %v435, 1.442695
      %v439 = vpow.pop %v438
      %v440 = vsel %vm308, %v437, 0.0
      %v441 = vsel %vm308, %v439, 0.0
      %v442 = vadd.f32 %v440, %v441
      %v443 = vrot.slane %v442, 4
      %v444 = vadd.f32 %v442, %v443
      %v445 = vrot.slane %v444, 2
      %v446 = vadd.f32 %v444, %v445
      %v447 = vrot.slane %v446, 1
      %v448 = vadd.f32 %v446, %v447
      %v449 = vrcp.pop %v448
      %v450 = vmul.f32 %v437, %v449
      %v451 = vmul.f32 %v439, %v449
      %v452 = vld [vmem:[%s212 + $0x20] sm:$0xff]
      %v453 = vld [vmem:[%s212 + $0x28] sm:$0xff]
      %v454 = vld [vmem:[%s207 + $0x320] sm:$0xff]
      %v455 = vld [vmem:[%s207 + $0x328] sm:$0xff]
      %v456 = vld [vmem:[%s207 + $0x330] sm:$0xff]
      %v457 = vld [vmem:[%s207 + $0x338] sm:$0xff]
      %v459 = vsel %vm224, %v452, 0
      %v462 = vsel %vm224, %v453, 0
      %464 = vmatprep.subr.mxu0 0.0
      %465 = vmatpush1.msra.mxu0 %v454
      %466 = vmatprep.subr.mxu0 0.0
      %467 = vmatpush1.msra.mxu0 %v455
      %468 = vmatprep.subr.mxu0 0.0
      %469 = vmatpush1.msra.mxu0 %v456
      %470 = vmatprep.subr.mxu0 0.0
      %471 = vmatpush1.msra.mxu0 %v457
      %472 = vmatprep.subr.mxu0 0.0
      %473 = vmatpush1.msra.mxu0 0.0
      %474 = vmatprep.subr.mxu0 0.0
      %475 = vmatpush1.msra.mxu0 0.0
      %476 = vmatprep.subr.mxu0 0.0
      %477 = vmatpush1.msra.mxu0 0.0
      %478 = vmatprep.subr.mxu0 0.0
      %479 = vmatpush1.msra.mxu0 0.0
      %480 = vmatprep.subr.mxu0 0.0
      %481 = vmatpush1.msra.mxu0 0.0
      %482 = vmatprep.subr.mxu0 0.0
      %483 = vmatpush1.msra.mxu0 0.0
      %484 = vmatprep.subr.mxu0 0.0
      %485 = vmatpush1.msra.mxu0 0.0
      %486 = vmatprep.subr.mxu0 0.0
      %487 = vmatpush1.msra.mxu0 0.0
      %488 = vmatprep.subr.mxu0 0.0
      %489 = vmatpush1.msra.mxu0 0.0
      %490 = vmatprep.subr.mxu0 0.0
      %491 = vmatpush1.msra.mxu0 0.0
      %492 = vmatprep.subr.mxu0 0.0
      %493 = vmatpush1.msra.mxu0 0.0
      %494 = vmatprep.subr.mxu0 0.0
      %495 = vmatpush1.msra.mxu0 0.0
      %496 = vmatprep.subr.mxu0 0.0
      %497 = vmatpush1.msra.mxu0 0.0
      %498 = vmatprep.subr.mxu0 0.0
      %499 = vmatpush1.msra.mxu0 0.0
      %500 = vmatprep.subr.mxu0 0.0
      %501 = vmatpush1.msra.mxu0 0.0
      %502 = vmatprep.subr.mxu0 0.0
      %503 = vmatpush1.msra.mxu0 0.0
      %504 = vmatprep.subr.mxu0 0.0
      %505 = vmatpush1.msra.mxu0 0.0
      %506 = vmatprep.subr.mxu0 0.0
      %507 = vmatpush1.msra.mxu0 0.0
      %508 = vmatprep.subr.mxu0 0.0
      %509 = vmatpush1.msra.mxu0 0.0
      %510 = vmatprep.subr.mxu0 0.0
      %511 = vmatpush1.msra.mxu0 0.0
      %512 = vmatprep.subr.mxu0 0.0
      %513 = vmatpush1.msra.mxu0 0.0
      %514 = vmatprep.subr.mxu0 0.0
      %515 = vmatpush1.msra.mxu0 0.0
      %516 = vmatprep.subr.mxu0 0.0
      %517 = vmatpush1.msra.mxu0 0.0
      %518 = vmatprep.subr.mxu0 0.0
      %519 = vmatpush1.msra.mxu0 0.0
      %520 = vmatprep.subr.mxu0 0.0
      %521 = vmatpush1.msra.mxu0 0.0
      %522 = vmatprep.subr.mxu0 0.0
      %523 = vmatpush1.msra.mxu0 0.0
      %524 = vmatprep.subr.mxu0 0.0
      %525 = vmatpush1.msra.mxu0 0.0
      %526 = vmatprep.subr.mxu0 0.0
      %527 = vmatpush1.msra.mxu0 0.0
      %528 = vmatprep.mubr.f32.mxu0 0.0
      %529 = vmatmul.mubr.f32.gmra.mrb[0].mxu0 %v459
      %v530 = vpop.f32.mrb[0].mxu0
      %v531 = vadd.f32 0.0, %v530
      %v532 = vpop.f32.mrb[0].mxu0
      %533 = vmatprep.mubr.f32.mxu0 0.0
      %534 = vmatmul.mubr.f32.gmra.mrb[0].mxu0 %v462
      %v535 = vpop.f32.mrb[0].mxu0
      %v536 = vadd.f32 0.0, %v535
      %v537 = vpop.f32.mrb[0].mxu0
      %538 = vdwg.mxu0
      %v539 = vmul.f32 %v531, 0.03125
      %v540 = vmul.f32 %v536, 0.03125
      %v541 = vsel %vm308, %v539, -inf
      %v542 = vsel %vm308, %v540, -inf
      %v543 = vmax.f32 %v541, %v542
      %v544 = vrot.slane %v543, 4
      %v545 = vmax.f32 %v543, %v544
      %v546 = vrot.slane %v545, 2
      %v547 = vmax.f32 %v545, %v546
      %v548 = vrot.slane %v547, 1
      %v549 = vmax.f32 %v547, %v548
      %v550 = vsub.f32 %v539, %v549
      %v551 = vsub.f32 %v540, %v549
      %v552 = vmul.f32 %v550, 1.442695
      %v553 = vpow.pop %v552
      %v554 = vmul.f32 %v551, 1.442695
      %v555 = vpow.pop %v554
      %v556 = vsel %vm308, %v553, 0.0
      %v557 = vsel %vm308, %v555, 0.0
      %v558 = vadd.f32 %v556, %v557
      %v559 = vrot.slane %v558, 4
      %v560 = vadd.f32 %v558, %v559
      %v561 = vrot.slane %v560, 2
      %v562 = vadd.f32 %v560, %v561
      %v563 = vrot.slane %v562, 1
      %v564 = vadd.f32 %v562, %v563
      %v565 = vrcp.pop %v564
      %v566 = vmul.f32 %v553, %v565
      %v567 = vmul.f32 %v555, %v565
      %v568 = vld [vmem:[%s2] sm:$0xff]
      %v569 = vld [vmem:[%s2 + $0x8] sm:$0xff]
      %v570 = vld [vmem:[%s2 + $0x10] sm:$0xff]
      %v571 = vld [vmem:[%s2 + $0x18] sm:$0xff]
      %v572 = vld [vmem:[%s2 + $0x20] sm:$0xff]
      %v573 = vld [vmem:[%s2 + $0x28] sm:$0xff]
      %v574 = vadd.f32 %v334, %v568
      %v575 = vadd.f32 %v335, %v569
      %v576 = vadd.f32 %v450, %v570
      %v577 = vadd.f32 %v451, %v571
      %v578 = vadd.f32 %v566, %v572
      %v579 = vadd.f32 %v567, %v573
      %v580 = vld [vmem:[%s207] sm:$0xff]
      %v581 = vld [vmem:[%s207 + $0x8] sm:$0xff]
      %v582 = vld [vmem:[%s207 + $0x10] sm:$0xff]
      %v583 = vld [vmem:[%s207 + $0x18] sm:$0xff]
      %v584 = vld [vmem:[%s207 + $0x20] sm:$0xff]
      %v585 = vld [vmem:[%s207 + $0x28] sm:$0xff]
      %v586 = vld [vmem:[%s207 + $0x30] sm:$0xff]
      %v587 = vld [vmem:[%s207 + $0x38] sm:$0xff]
      %v588 = vld [vmem:[%s207 + $0x40] sm:$0xff]
      %v589 = vld [vmem:[%s207 + $0x48] sm:$0xff]
      %v590 = vld [vmem:[%s207 + $0x50] sm:$0xff]
      %v591 = vld [vmem:[%s207 + $0x58] sm:$0xff]
      %v592 = vld [vmem:[%s207 + $0x60] sm:$0xff]
      %v593 = vld [vmem:[%s207 + $0x68] sm:$0xff]
      %v594 = vld [vmem:[%s207 + $0x70] sm:$0xff]
      %v595 = vld [vmem:[%s207 + $0x78] sm:$0xff]
      %v596 = vld [vmem:[%s207 + $0x80] sm:$0xff]
      %v597 = vld [vmem:[%s207 + $0x88] sm:$0xff]
      %v598 = vld [vmem:[%s207 + $0x90] sm:$0xff]
      %v599 = vld [vmem:[%s207 + $0x98] sm:$0xff]
      %v600 = vld [vmem:[%s207 + $0xa0] sm:$0xff]
      %v601 = vld [vmem:[%s207 + $0xa8] sm:$0xff]
      %v602 = vld [vmem:[%s207 + $0xb0] sm:$0xff]
      %v603 = vld [vmem:[%s207 + $0xb8] sm:$0xff]
      %v604 = vld [vmem:[%s207 + $0xc0] sm:$0xff]
      %v605 = vld [vmem:[%s207 + $0xc8] sm:$0xff]
      %v606 = vld [vmem:[%s207 + $0xd0] sm:$0xff]
      %v607 = vld [vmem:[%s207 + $0xd8] sm:$0xff]
      %v608 = vld [vmem:[%s207 + $0xe0] sm:$0xff]
      %v609 = vld [vmem:[%s207 + $0xe8] sm:$0xff]
      %v610 = vld [vmem:[%s207 + $0xf0] sm:$0xff]
      %v611 = vld [vmem:[%s207 + $0xf8] sm:$0xff]
      %v612 = vld [vmem:[%s207 + $0x100] sm:$0xff]
      %v613 = vld [vmem:[%s207 + $0x108] sm:$0xff]
      %v614 = vld [vmem:[%s207 + $0x110] sm:$0xff]
      %v615 = vld [vmem:[%s207 + $0x118] sm:$0xff]
      %v616 = vld [vmem:[%s207 + $0x120] sm:$0xff]
      %v617 = vld [vmem:[%s207 + $0x128] sm:$0xff]
      %v618 = vld [vmem:[%s207 + $0x130] sm:$0xff]
      %v619 = vld [vmem:[%s207 + $0x138] sm:$0xff]
      %v620 = vld [vmem:[%s207 + $0x140] sm:$0xff]
      %v621 = vld [vmem:[%s207 + $0x148] sm:$0xff]
      %v622 = vld [vmem:[%s207 + $0x150] sm:$0xff]
      %v623 = vld [vmem:[%s207 + $0x158] sm:$0xff]
      %v624 = vld [vmem:[%s207 + $0x160] sm:$0xff]
      %v625 = vld [vmem:[%s207 + $0x168] sm:$0xff]
      %v626 = vld [vmem:[%s207 + $0x170] sm:$0xff]
      %v627 = vld [vmem:[%s207 + $0x178] sm:$0xff]
      %644 = vrot.lane.b32.xlu0 %v596, 16
      %v645 = vpop.permute.xlu0 %644
      %646 = vrot.lane.b32.xlu0 %v597, 16
      %v647 = vpop.permute.xlu0 %646
      %648 = vrot.lane.b32.xlu0 %v598, 16
      %v649 = vpop.permute.xlu0 %648
      %650 = vrot.lane.b32.xlu0 %v599, 16
      %v651 = vpop.permute.xlu0 %650
      %652 = vrot.lane.b32.xlu0 %v600, 16
      %v653 = vpop.permute.xlu0 %652
      %654 = vrot.lane.b32.xlu0 %v601, 16
      %v655 = vpop.permute.xlu0 %654
      %656 = vrot.lane.b32.xlu0 %v602, 16
      %v657 = vpop.permute.xlu0 %656
      %658 = vrot.lane.b32.xlu0 %v603, 16
      %v659 = vpop.permute.xlu0 %658
      %660 = vrot.lane.b32.xlu0 %v604, 16
      %v661 = vpop.permute.xlu0 %660
      %662 = vrot.lane.b32.xlu0 %v605, 16
      %v663 = vpop.permute.xlu0 %662
      %664 = vrot.lane.b32.xlu0 %v606, 16
      %v665 = vpop.permute.xlu0 %664
      %666 = vrot.lane.b32.xlu0 %v607, 16
      %v667 = vpop.permute.xlu0 %666
      %668 = vrot.lane.b32.xlu0 %v608, 16
      %v669 = vpop.permute.xlu0 %668
      %670 = vrot.lane.b32.xlu0 %v609, 16
      %v671 = vpop.permute.xlu0 %670
      %672 = vrot.lane.b32.xlu0 %v610, 16
      %v673 = vpop.permute.xlu0 %672
      %674 = vrot.lane.b32.xlu0 %v611, 16
      %v675 = vpop.permute.xlu0 %674
      %708 = vrot.lane.b32.xlu0 %v612, 32
      %v709 = vpop.permute.xlu0 %708
      %710 = vrot.lane.b32.xlu0 %v613, 32
      %v711 = vpop.permute.xlu0 %710
      %712 = vrot.lane.b32.xlu0 %v614, 32
      %v713 = vpop.permute.xlu0 %712
      %714 = vrot.lane.b32.xlu0 %v615, 32
      %v715 = vpop.permute.xlu0 %714
      %716 = vrot.lane.b32.xlu0 %v616, 32
      %v717 = vpop.permute.xlu0 %716
      %718 = vrot.lane.b32.xlu0 %v617, 32
      %v719 = vpop.permute.xlu0 %718
      %720 = vrot.lane.b32.xlu0 %v618, 32
      %v721 = vpop.permute.xlu0 %720
      %722 = vrot.lane.b32.xlu0 %v619, 32
      %v723 = vpop.permute.xlu0 %722
      %724 = vrot.lane.b32.xlu0 %v620, 32
      %v725 = vpop.permute.xlu0 %724
      %726 = vrot.lane.b32.xlu0 %v621, 32
      %v727 = vpop.permute.xlu0 %726
      %728 = vrot.lane.b32.xlu0 %v622, 32
      %v729 = vpop.permute.xlu0 %728
      %730 = vrot.lane.b32.xlu0 %v623, 32
      %v731 = vpop.permute.xlu0 %730
      %732 = vrot.lane.b32.xlu0 %v624, 32
      %v733 = vpop.permute.xlu0 %732
      %734 = vrot.lane.b32.xlu0 %v625, 32
      %v735 = vpop.permute.xlu0 %734
      %736 = vrot.lane.b32.xlu0 %v626, 32
      %v737 = vpop.permute.xlu0 %736
      %738 = vrot.lane.b32.xlu0 %v627, 32
      %v739 = vpop.permute.xlu0 %738
      %v756 = vsel %vm308, %v580, %v645
      %v757 = vsel %vm308, %v581, %v647
      %v758 = vsel %vm308, %v582, %v649
      %v759 = vsel %vm308, %v583, %v651
      %v760 = vsel %vm308, %v584, %v653
      %v761 = vsel %vm308, %v585, %v655
      %v762 = vsel %vm308, %v586, %v657
      %v763 = vsel %vm308, %v587, %v659
      %v764 = vsel %vm308, %v588, %v661
      %v765 = vsel %vm308, %v589, %v663
      %v766 = vsel %vm308, %v590, %v665
      %v767 = vsel %vm308, %v591, %v667
      %v768 = vsel %vm308, %v592, %v669
      %v769 = vsel %vm308, %v593, %v671
      %v770 = vsel %vm308, %v594, %v673
      %v771 = vsel %vm308, %v595, %v675
      %v772 = vsel %vm224, %v756, %v709
      %v773 = vsel %vm224, %v757, %v711
      %v774 = vsel %vm224, %v758, %v713
      %v775 = vsel %vm224, %v759, %v715
      %v776 = vsel %vm224, %v760, %v717
      %v777 = vsel %vm224, %v761, %v719
      %v778 = vsel %vm224, %v762, %v721
      %v779 = vsel %vm224, %v763, %v723
      %v780 = vsel %vm224, %v764, %v725
      %v781 = vsel %vm224, %v765, %v727
      %v782 = vsel %vm224, %v766, %v729
      %v783 = vsel %vm224, %v767, %v731
      %v784 = vsel %vm224, %v768, %v733
      %v785 = vsel %vm224, %v769, %v735
      %v786 = vsel %vm224, %v770, %v737
      %v787 = vsel %vm224, %v771, %v739
      %v788 = vld [vmem:[%s207 + $0x180] sm:$0xff]
      %v789 = vld [vmem:[%s207 + $0x188] sm:$0xff]
      %v790 = vld [vmem:[%s207 + $0x190] sm:$0xff]
      %v791 = vld [vmem:[%s207 + $0x198] sm:$0xff]
      %v792 = vld [vmem:[%s207 + $0x1a0] sm:$0xff]
      %v793 = vld [vmem:[%s207 + $0x1a8] sm:$0xff]
      %v794 = vld [vmem:[%s207 + $0x1b0] sm:$0xff]
      %v795 = vld [vmem:[%s207 + $0x1b8] sm:$0xff]
      %v796 = vld [vmem:[%s207 + $0x1c0] sm:$0xff]
      %v797 = vld [vmem:[%s207 + $0x1c8] sm:$0xff]
      %v798 = vld [vmem:[%s207 + $0x1d0] sm:$0xff]
      %v799 = vld [vmem:[%s207 + $0x1d8] sm:$0xff]
      %v800 = vld [vmem:[%s207 + $0x1e0] sm:$0xff]
      %v801 = vld [vmem:[%s207 + $0x1e8] sm:$0xff]
      %v802 = vld [vmem:[%s207 + $0x1f0] sm:$0xff]
      %v803 = vld [vmem:[%s207 + $0x1f8] sm:$0xff]
      %v804 = vld [vmem:[%s3] sm:$0xff]
      %v805 = vld [vmem:[%s3 + $0x8] sm:$0xff]
      %v806 = vld [vmem:[%s3 + $0x10] sm:$0xff]
      %v807 = vld [vmem:[%s3 + $0x18] sm:$0xff]
      %v808 = vld [vmem:[%s3 + $0x20] sm:$0xff]
      %v809 = vld [vmem:[%s3 + $0x28] sm:$0xff]
      %v810 = vld [vmem:[%s3 + $0x30] sm:$0xff]
      %v811 = vld [vmem:[%s3 + $0x38] sm:$0xff]
      %v812 = vld [vmem:[%s3 + $0x40] sm:$0xff]
      %v813 = vld [vmem:[%s3 + $0x48] sm:$0xff]
      %v814 = vld [vmem:[%s3 + $0x50] sm:$0xff]
      %v815 = vld [vmem:[%s3 + $0x58] sm:$0xff]
      %v816 = vld [vmem:[%s3 + $0x60] sm:$0xff]
      %v817 = vld [vmem:[%s3 + $0x68] sm:$0xff]
      %v818 = vld [vmem:[%s3 + $0x70] sm:$0xff]
      %v819 = vld [vmem:[%s3 + $0x78] sm:$0xff]
      %821 = vset.pattern.permute.xlu0 0
      %822 = vperm.xlu0 %821, %v804
      %v823 = vpop.permute.xlu0 %822
      %826 = vset.pattern.permute.xlu0 0
      %827 = vperm.xlu0 %826, %v805
      %v828 = vpop.permute.xlu0 %827
      %831 = vset.pattern.permute.xlu0 0
      %832 = vperm.xlu0 %831, %v806
      %v833 = vpop.permute.xlu0 %832
      %836 = vset.pattern.permute.xlu0 0
      %837 = vperm.xlu0 %836, %v807
      %v838 = vpop.permute.xlu0 %837
      %841 = vset.pattern.permute.xlu0 0
      %842 = vperm.xlu0 %841, %v808
      %v843 = vpop.permute.xlu0 %842
      %846 = vset.pattern.permute.xlu0 0
      %847 = vperm.xlu0 %846, %v809
      %v848 = vpop.permute.xlu0 %847
      %851 = vset.pattern.permute.xlu0 0
      %852 = vperm.xlu0 %851, %v810
      %v853 = vpop.permute.xlu0 %852
      %856 = vset.pattern.permute.xlu0 0
      %857 = vperm.xlu0 %856, %v811
      %v858 = vpop.permute.xlu0 %857
      %861 = vset.pattern.permute.xlu0 0
      %862 = vperm.xlu0 %861, %v812
      %v863 = vpop.permute.xlu0 %862
      %866 = vset.pattern.permute.xlu0 0
      %867 = vperm.xlu0 %866, %v813
      %v868 = vpop.permute.xlu0 %867
      %871 = vset.pattern.permute.xlu0 0
      %872 = vperm.xlu0 %871, %v814
      %v873 = vpop.permute.xlu0 %872
      %876 = vset.pattern.permute.xlu0 0
      %877 = vperm.xlu0 %876, %v815
      %v878 = vpop.permute.xlu0 %877
      %881 = vset.pattern.permute.xlu0 0
      %882 = vperm.xlu0 %881, %v816
      %v883 = vpop.permute.xlu0 %882
      %886 = vset.pattern.permute.xlu0 0
      %887 = vperm.xlu0 %886, %v817
      %v888 = vpop.permute.xlu0 %887
      %891 = vset.pattern.permute.xlu0 0
      %892 = vperm.xlu0 %891, %v818
      %v893 = vpop.permute.xlu0 %892
      %896 = vset.pattern.permute.xlu0 0
      %897 = vperm.xlu0 %896, %v819
      %v898 = vpop.permute.xlu0 %897
      %vm900 = vcmask 392192
      %v902 = vsel %vm900, %v772, 0
      %v905 = vsel %vm900, %v773, 0
      %v908 = vsel %vm900, %v774, 0
      %v911 = vsel %vm900, %v775, 0
      %v914 = vsel %vm900, %v776, 0
      %v917 = vsel %vm900, %v777, 0
      %v920 = vsel %vm900, %v778, 0
      %v923 = vsel %vm900, %v779, 0
      %v926 = vsel %vm900, %v780, 0
      %v929 = vsel %vm900, %v781, 0
      %v932 = vsel %vm900, %v782, 0
      %v935 = vsel %vm900, %v783, 0
      %v938 = vsel %vm900, %v784, 0
      %v941 = vsel %vm900, %v785, 0
      %v944 = vsel %vm900, %v786, 0
      %v947 = vsel %vm900, %v787, 0
      %949 = vmatprep.subr.mxu0 0.0
      %950 = vmatpush1.msra.mxu0 %v574
      %951 = vmatprep.subr.mxu0 0.0
      %952 = vmatpush1.msra.mxu0 %v575
      %953 = vmatprep.subr.mxu0 0.0
      %954 = vmatpush1.msra.mxu0 %v576
      %955 = vmatprep.subr.mxu0 0.0
      %956 = vmatpush1.msra.mxu0 %v577
      %957 = vmatprep.subr.mxu0 0.0
      %958 = vmatpush1.msra.mxu0 %v578
      %959 = vmatprep.subr.mxu0 0.0
      %960 = vmatpush1.msra.mxu0 %v579
      %961 = vmatprep.subr.mxu0 0.0
      %962 = vmatpush1.msra.mxu0 0.0
      %963 = vmatprep.subr.mxu0 0.0
      %964 = vmatpush1.msra.mxu0 0.0
      %965 = vmatprep.subr.mxu0 0.0
      %966 = vmatpush1.msra.mxu0 0.0
      %967 = vmatprep.subr.mxu0 0.0
      %968 = vmatpush1.msra.mxu0 0.0
      %969 = vmatprep.subr.mxu0 0.0
      %970 = vmatpush1.msra.mxu0 0.0
      %971 = vmatprep.subr.mxu0 0.0
      %972 = vmatpush1.msra.mxu0 0.0
      %973 = vmatprep.subr.mxu0 0.0
      %974 = vmatpush1.msra.mxu0 0.0
      %975 = vmatprep.subr.mxu0 0.0
      %976 = vmatpush1.msra.mxu0 0.0
      %977 = vmatprep.subr.mxu0 0.0
      %978 = vmatpush1.msra.mxu0 0.0
      %979 = vmatprep.subr.mxu0 0.0
      %980 = vmatpush1.msra.mxu0 0.0
      %981 = vmatprep.subr.mxu0 0.0
      %982 = vmatpush1.msra.mxu0 0.0
      %983 = vmatprep.subr.mxu0 0.0
      %984 = vmatpush1.msra.mxu0 0.0
      %985 = vmatprep.subr.mxu0 0.0
      %986 = vmatpush1.msra.mxu0 0.0
      %987 = vmatprep.subr.mxu0 0.0
      %988 = vmatpush1.msra.mxu0 0.0
      %989 = vmatprep.subr.mxu0 0.0
      %990 = vmatpush1.msra.mxu0 0.0
      %991 = vmatprep.subr.mxu0 0.0
      %992 = vmatpush1.msra.mxu0 0.0
      %993 = vmatprep.subr.mxu0 0.0
      %994 = vmatpush1.msra.mxu0 0.0
      %995 = vmatprep.subr.mxu0 0.0
      %996 = vmatpush1.msra.mxu0 0.0
      %997 = vmatprep.subr.mxu0 0.0
      %998 = vmatpush1.msra.mxu0 0.0
      %999 = vmatprep.subr.mxu0 0.0
      %1000 = vmatpush1.msra.mxu0 0.0
      %1001 = vmatprep.subr.mxu0 0.0
      %1002 = vmatpush1.msra.mxu0 0.0
      %1003 = vmatprep.subr.mxu0 0.0
      %1004 = vmatpush1.msra.mxu0 0.0
      %1005 = vmatprep.subr.mxu0 0.0
      %1006 = vmatpush1.msra.mxu0 0.0
      %1007 = vmatprep.subr.mxu0 0.0
      %1008 = vmatpush1.msra.mxu0 0.0
      %1009 = vmatprep.subr.mxu0 0.0
      %1010 = vmatpush1.msra.mxu0 0.0
      %1011 = vmatprep.subr.mxu0 0.0
      %1012 = vmatpush1.msra.mxu0 0.0
      %1013 = vmatprep.mubr.f32.mxu0 0.0
      %1014 = vmatmul.mubr.f32.gmra.mrb[0].mxu0 %v902
      %v1015 = vpop.f32.mrb[0].mxu0
      %v1016 = vadd.f32 %v823, %v1015
      %v1017 = vpop.f32.mrb[0].mxu0
      %1018 = vmatprep.mubr.f32.mxu0 0.0
      %1019 = vmatmul.mubr.f32.gmra.mrb[0].mxu0 %v905
      %v1020 = vpop.f32.mrb[0].mxu0
      %v1021 = vadd.f32 %v828, %v1020
      %v1022 = vpop.f32.mrb[0].mxu0
      %1023 = vmatprep.mubr.f32.mxu0 0.0
      %1024 = vmatmul.mubr.f32.gmra.mrb[0].mxu0 %v908
      %v1025 = vpop.f32.mrb[0].mxu0
      %v1026 = vadd.f32 %v833, %v1025
      %v1027 = vpop.f32.mrb[0].mxu0
      %1028 = vmatprep.mubr.f32.mxu0 0.0
      %1029 = vmatmul.mubr.f32.gmra.mrb[0].mxu0 %v911
      %v1030 = vpop.f32.mrb[0].mxu0
      %v1031 = vadd.f32 %v838, %v1030
      %v1032 = vpop.f32.mrb[0].mxu0
      %1033 = vmatprep.mubr.f32.mxu0 0.0
      %1034 = vmatmul.mubr.f32.gmra.mrb[0].mxu0 %v914
      %v1035 = vpop.f32.mrb[0].mxu0
      %v1036 = vadd.f32 %v843, %v1035
      %v1037 = vpop.f32.mrb[0].mxu0
      %1038 = vmatprep.mubr.f32.mxu0 0.0
      %1039 = vmatmul.mubr.f32.gmra.mrb[0].mxu0 %v917
      %v1040 = vpop.f32.mrb[0].mxu0
      %v1041 = vadd.f32 %v848, %v1040
      %v1042 = vpop.f32.mrb[0].mxu0
      %1043 = vmatprep.mubr.f32.mxu0 0.0
      %1044 = vmatmul.mubr.f32.gmra.mrb[0].mxu0 %v920
      %v1045 = vpop.f32.mrb[0].mxu0
      %v1046 = vadd.f32 %v853, %v1045
      %v1047 = vpop.f32.mrb[0].mxu0
      %1048 = vmatprep.mubr.f32.mxu0 0.0
      %1049 = vmatmul.mubr.f32.gmra.mrb[0].mxu0 %v923
      %v1050 = vpop.f32.mrb[0].mxu0
      %v1051 = vadd.f32 %v858, %v1050
      %v1052 = vpop.f32.mrb[0].mxu0
      %1053 = vmatprep.mubr.f32.mxu0 0.0
      %1054 = vmatmul.mubr.f32.gmra.mrb[0].mxu0 %v926
      %v1055 = vpop.f32.mrb[0].mxu0
      %v1056 = vadd.f32 %v863, %v1055
      %v1057 = vpop.f32.mrb[0].mxu0
      %1058 = vmatprep.mubr.f32.mxu0 0.0
      %1059 = vmatmul.mubr.f32.gmra.mrb[0].mxu0 %v929
      %v1060 = vpop.f32.mrb[0].mxu0
      %v1061 = vadd.f32 %v868, %v1060
      %v1062 = vpop.f32.mrb[0].mxu0
      %1063 = vmatprep.mubr.f32.mxu0 0.0
      %1064 = vmatmul.mubr.f32.gmra.mrb[0].mxu0 %v932
      %v1065 = vpop.f32.mrb[0].mxu0
      %v1066 = vadd.f32 %v873, %v1065
      %v1067 = vpop.f32.mrb[0].mxu0
      %1068 = vmatprep.mubr.f32.mxu0 0.0
      %1069 = vmatmul.mubr.f32.gmra.mrb[0].mxu0 %v935
      %v1070 = vpop.f32.mrb[0].mxu0
      %v1071 = vadd.f32 %v878, %v1070
      %v1072 = vpop.f32.mrb[0].mxu0
      %1073 = vmatprep.mubr.f32.mxu0 0.0
      %1074 = vmatmul.mubr.f32.gmra.mrb[0].mxu0 %v938
      %v1075 = vpop.f32.mrb[0].mxu0
      %v1076 = vadd.f32 %v883, %v1075
      %v1077 = vpop.f32.mrb[0].mxu0
      %1078 = vmatprep.mubr.f32.mxu0 0.0
      %1079 = vmatmul.mubr.f32.gmra.mrb[0].mxu0 %v941
      %v1080 = vpop.f32.mrb[0].mxu0
      %v1081 = vadd.f32 %v888, %v1080
      %v1082 = vpop.f32.mrb[0].mxu0
      %1083 = vmatprep.mubr.f32.mxu0 0.0
      %1084 = vmatmul.mubr.f32.gmra.mrb[0].mxu0 %v944
      %v1085 = vpop.f32.mrb[0].mxu0
      %v1086 = vadd.f32 %v893, %v1085
      %v1087 = vpop.f32.mrb[0].mxu0
      %1088 = vmatprep.mubr.f32.mxu0 0.0
      %1089 = vmatmul.mubr.f32.gmra.mrb[0].mxu0 %v947
      %v1090 = vpop.f32.mrb[0].mxu0
      %v1091 = vadd.f32 %v898, %v1090
      %v1092 = vpop.f32.mrb[0].mxu0
      %1093 = vdwg.mxu0
      %v1094 = vmul.f32 %v1016, 9.99995e-07
      %v1095 = vmul.f32 %v1021, 9.99995e-07
      %v1096 = vmul.f32 %v1026, 9.99995e-07
      %v1097 = vmul.f32 %v1031, 9.99995e-07
      %v1098 = vmul.f32 %v1036, 9.99995e-07
      %v1099 = vmul.f32 %v1041, 9.99995e-07
      %v1100 = vmul.f32 %v1046, 9.99995e-07
      %v1101 = vmul.f32 %v1051, 9.99995e-07
      %v1102 = vmul.f32 %v1056, 9.99995e-07
      %v1103 = vmul.f32 %v1061, 9.99995e-07
      %v1104 = vmul.f32 %v1066, 9.99995e-07
      %v1105 = vmul.f32 %v1071, 9.99995e-07
      %v1106 = vmul.f32 %v1076, 9.99995e-07
      %v1107 = vmul.f32 %v1081, 9.99995e-07
      %v1108 = vmul.f32 %v1086, 9.99995e-07
      %v1109 = vmul.f32 %v1091, 9.99995e-07
      %v1110 = vadd.f32 %v1094, %v788
      %v1111 = vadd.f32 %v1095, %v789
      %v1112 = vadd.f32 %v1096, %v790
      %v1113 = vadd.f32 %v1097, %v791
      %v1114 = vadd.f32 %v1098, %v792
      %v1115 = vadd.f32 %v1099, %v793
      %v1116 = vadd.f32 %v1100, %v794
      %v1117 = vadd.f32 %v1101, %v795
      %v1118 = vadd.f32 %v1102, %v796
      %v1119 = vadd.f32 %v1103, %v797
      %v1120 = vadd.f32 %v1104, %v798
      %v1121 = vadd.f32 %v1105, %v799
      %v1122 = vadd.f32 %v1106, %v800
      %v1123 = vadd.f32 %v1107, %v801
      %v1124 = vadd.f32 %v1108, %v802
      %v1125 = vadd.f32 %v1109, %v803
      %v1126 = vmax.f32 %v1110, 0.0
      %v1127 = vmax.f32 %v1111, 0.0
      %v1128 = vmax.f32 %v1112, 0.0
      %v1129 = vmax.f32 %v1113, 0.0
      %v1130 = vmax.f32 %v1114, 0.0
      %v1131 = vmax.f32 %v1115, 0.0
      %v1132 = vmax.f32 %v1116, 0.0
      %v1133 = vmax.f32 %v1117, 0.0
      %v1134 = vmax.f32 %v1118, 0.0
      %v1135 = vmax.f32 %v1119, 0.0
      %v1136 = vmax.f32 %v1120, 0.0
      %v1137 = vmax.f32 %v1121, 0.0
      %v1138 = vmax.f32 %v1122, 0.0
      %v1139 = vmax.f32 %v1123, 0.0
      %v1140 = vmax.f32 %v1124, 0.0
      %v1141 = vmax.f32 %v1125, 0.0
      %1142 = vst.msk [vmem:[%s217] sm:$0xff] %vm308, %v1126
      %1143 = vst.msk [vmem:[%s217 + $0x8] sm:$0xff] %vm308, %v1127
      %1144 = vst.msk [vmem:[%s217 + $0x10] sm:$0xff] %vm308, %v1128
      %1145 = vst.msk [vmem:[%s217 + $0x18] sm:$0xff] %vm308, %v1129
      %1146 = vst.msk [vmem:[%s217 + $0x20] sm:$0xff] %vm308, %v1130
      %1147 = vst.msk [vmem:[%s217 + $0x28] sm:$0xff] %vm308, %v1131
      %1148 = vst.msk [vmem:[%s217 + $0x30] sm:$0xff] %vm308, %v1132
      %1149 = vst.msk [vmem:[%s217 + $0x38] sm:$0xff] %vm308, %v1133
      %1150 = vst.msk [vmem:[%s217 + $0x40] sm:$0xff] %vm308, %v1134
      %1151 = vst.msk [vmem:[%s217 + $0x48] sm:$0xff] %vm308, %v1135
      %1152 = vst.msk [vmem:[%s217 + $0x50] sm:$0xff] %vm308, %v1136
      %1153 = vst.msk [vmem:[%s217 + $0x58] sm:$0xff] %vm308, %v1137
      %1154 = vst.msk [vmem:[%s217 + $0x60] sm:$0xff] %vm308, %v1138
      %1155 = vst.msk [vmem:[%s217 + $0x68] sm:$0xff] %vm308, %v1139
      %1156 = vst.msk [vmem:[%s217 + $0x70] sm:$0xff] %vm308, %v1140
      %1157 = vst.msk [vmem:[%s217 + $0x78] sm:$0xff] %vm308, %v1141
      %p1158 = scmp.lt.s32.totalorder %s15, 1
      %s1159 = scalar_select %p1158, %s15, 1
      %s1160 = smul.addr %s1159, 16
      %s1161 = smul.addr %s1160, 8
      %s1162 = scalar_lea.vmem %s4, %s1161
      // Predicated region
      $region37: #{spatial_temporal_conv.4} parent=35 // pred_check
        %p1163 = pneg %p127
      $region38: #{spatial_temporal_conv.4} parent=35 // pred_check_branch
        %1165 = sbr.rel (%p1163) target = $region40
      $region39: #{spatial_temporal_conv.4} parent=35 // pred_region
        _
      $region40: #{spatial_temporal_conv.4} parent=35 // pred_fallthru
        _
    $region36: #{spatial_temporal_conv.4} parent=5 // pred_fallthru
      _
    %p1166 = scmp.le.s32.totalorder 2, %s10
    // Predicated region
    $region41: #{spatial_temporal_conv.4} parent=5 // pred_check
      %p1167 = pneg %p1166
    $region42: #{spatial_temporal_conv.4} parent=5 // pred_check_branch
      %1169 = sbr.rel (%p1167) target = $region44
    $region43: #{spatial_temporal_conv.4} parent=5 // pred_region
      %s1170 = ssub.s32 %s10, 2
      // Predicated region
      $region45: #{spatial_temporal_conv.4} parent=43 // pred_check
        %p1171 = pneg %p133
      $region46: #{spatial_temporal_conv.4} parent=43 // pred_check_branch
        %1173 = sbr.rel (%p1171) target = $region48
      $region47: #{spatial_temporal_conv.4} parent=43 // pred_region
        %p1174 = scmp.lt.s32.totalorder %s16, 1
        %s1175 = scalar_select %p1174, %s16, 1
        %s1176 = smul.addr %s1175, 16
        %s1177 = smul.addr %s1176, 8
        %s1178 = scalar_lea.vmem %s4, %s1177
      $region48: #{spatial_temporal_conv.4} parent=43 // pred_fallthru
        _
    $region44: #{spatial_temporal_conv.4} parent=5 // pred_fallthru
      _
  $region6: #{spatial_temporal_conv.4} parent=0 // loop_footer
    %s14 = sadd.s32 1, %s10
  $region7: #{spatial_temporal_conv.4} parent=0 // loop_footer_branch
    %9 = sbr.rel target = $region3
  $region8: #{spatial_temporal_conv.4} parent=0 // loop_exit
    _

</llo_original>
